<compile_context>
chip_gen: v6e
topology: v6e:2x2x1
jax: 0.10.0
libtpu: 0.0.40
codegen_flags: <defaults>
</compile_context>

<pallas_src>
import math
import functools

import numpy as np
import jax
import jax.numpy as jnp
from jax.experimental import pallas as pl
from jax.experimental.pallas import tpu as pltpu

LN_EPS = 1e-5  # PyTorch nn.LayerNorm default


def _erf_poly(x):
    # Abramowitz & Stegun 7.1.26 rational approximation of erf
    # (max abs error ~1.5e-7 vs the exact erf torch.nn.GELU uses).
    a1, a2, a3, a4, a5 = 0.254829592, -0.284496736, 1.421413741, -1.453152027, 1.061405429
    p = 0.3275911
    sgn = jnp.where(x >= 0.0, 1.0, -1.0)
    ax = jnp.abs(x)
    t = 1.0 / (1.0 + p * ax)
    poly = ((((a5 * t + a4) * t + a3) * t + a2) * t + a1) * t
    y = 1.0 - poly * jnp.exp(-ax * ax)
    return sgn * y


def _gelu_exact(x):
    return 0.5 * x * (1.0 + _erf_poly(x * (1.0 / math.sqrt(2.0))))


def _layer_norm(v, w, b):
    mu = jnp.mean(v, axis=-1, keepdims=True)
    var = jnp.mean((v - mu) ** 2, axis=-1, keepdims=True)
    return (v - mu) * jax.lax.rsqrt(var + LN_EPS) * w + b


def _block_kernel(x_ref, ln1_w, ln1_b, w_in, b_in, w_out, b_out,
                  ln2_w, ln2_b, w_fc, b_fc, w_pr, b_pr,
                  o_ref, *, n_head):
    xb = x_ref[0]                       # (L, D) float32
    L, D = xb.shape
    hd = D // n_head

    # ---- ln_1 + multi-head self-attention ----
    h1 = _layer_norm(xb, ln1_w[0], ln1_b[0])                          # fp32 (L, D)

    # qkv projection: bf16 operands, fp32 MXU accumulation.
    # (1/sqrt(hd) is already folded into the q columns of w_in / b_in.)
    qkv = jnp.dot(h1.astype(jnp.bfloat16), w_in[...],
                  preferred_element_type=jnp.float32) + b_in[0]       # (L, 3D) fp32
    q16 = qkv[:, :D].astype(jnp.bfloat16)
    k16 = qkv[:, D:2 * D].astype(jnp.bfloat16)
    v16 = qkv[:, 2 * D:].astype(jnp.bfloat16)

    heads = []
    for h in range(n_head):              # static unrolled loop over heads
        lo, hi = h * hd, (h + 1) * hd
        # scores = q_h @ k_h^T  -> (L, L), fp32 accumulation
        s = jax.lax.dot_general(q16[:, lo:hi], k16[:, lo:hi],
                                (((1,), (1,)), ((), ())),
                                preferred_element_type=jnp.float32)
        s = s - jnp.max(s, axis=-1, keepdims=True)
        p = jnp.exp(s)
        p = p * pl.reciprocal(jnp.sum(p, axis=-1, keepdims=True), approx=True)
        heads.append(jnp.dot(p.astype(jnp.bfloat16), v16[:, lo:hi],
                             preferred_element_type=jnp.float32))     # (L, hd)

    # one full-K output projection instead of n_head tiny-K matmuls
    attn = jnp.concatenate(heads, axis=-1)                            # (L, D) fp32
    attn = jnp.dot(attn.astype(jnp.bfloat16), w_out[...],
                   preferred_element_type=jnp.float32) + b_out[0]

    # residual 1 (LayerScale gamma, if any, was folded into w_out / b_out)
    x1 = xb + attn

    # ---- ln_2 + MLP (c_fc -> GELU -> c_proj) ----
    h2 = _layer_norm(x1, ln2_w[0], ln2_b[0])
    hid = jnp.dot(h2.astype(jnp.bfloat16), w_fc[...],
                  preferred_element_type=jnp.float32) + b_fc[0]       # (L, M) fp32
    hid = _gelu_exact(hid)                                            # fp32 GELU
    mlp = jnp.dot(hid.astype(jnp.bfloat16), w_pr[...],
                  preferred_element_type=jnp.float32) + b_pr[0]       # (L, D) fp32

    # residual 2 (gamma folded into w_pr / b_pr)
    o_ref[0] = x1 + mlp


def _estimate_vmem_bytes(L, D, M, weights):
    wbytes = sum(int(w.size) * w.dtype.itemsize for w in weights)
    act = L * (3 * D) * 6 + 8 * L * D * 6 + L * M * 6 + 4 * L * L * 4
    io = 2 * 2 * (L * D * 4)              # double-buffered x / out blocks
    return 2 * wbytes + act + io          # weights double-buffered by the pipeline


def residual_attention_block(x, params, *, n_head):
    """x: (L, B, D) float32. Returns (L, B, D) float32."""
    L, B, D = x.shape
    assert D % n_head == 0, "d_model must be divisible by n_head"
    hd = D // n_head
    M = params["fc_w"].shape[0]
    f32, bf16 = jnp.float32, jnp.bfloat16

    # --- kernel-side parameter layouts (x @ W form, bf16 matmul weights) ---
    scale = 1.0 / math.sqrt(hd)
    qkv_scale = jnp.concatenate([jnp.full((D,), scale, f32),
                                 jnp.ones((2 * D,), f32)])
    in_w = params["in_w"].astype(f32) * qkv_scale[:, None]        # (3D, D)
    w_in = in_w.T.astype(bf16)                                    # (D, 3D) bf16
    b_in = (params["in_b"].astype(f32) * qkv_scale).reshape(1, 3 * D)

    g1 = params.get("g1", None)          # LayerScale gammas (None -> Identity)
    g2 = params.get("g2", None)

    out_w = params["out_w"].astype(f32)                           # (D, D)
    out_b = params["out_b"].astype(f32)
    if g1 is not None:                   # fold gamma into the projection
        out_w = out_w * g1[:, None]
        out_b = out_b * g1
    w_out = out_w.T.astype(bf16)                                  # (D, D) bf16
    b_out = out_b.reshape(1, D)

    w_fc = params["fc_w"].astype(f32).T.astype(bf16)              # (D, M) bf16
    b_fc = params["fc_b"].astype(f32).reshape(1, M)

    pr_w = params["pr_w"].astype(f32)                             # (D, M)
    pr_b = params["pr_b"].astype(f32)
    if g2 is not None:
        pr_w = pr_w * g2[:, None]
        pr_b = pr_b * g2
    w_pr = pr_w.T.astype(bf16)                                    # (M, D) bf16
    b_pr = pr_b.reshape(1, D)

    ln1_w = params["ln1_w"].astype(f32).reshape(1, D)
    ln1_b = params["ln1_b"].astype(f32).reshape(1, D)
    ln2_w = params["ln2_w"].astype(f32).reshape(1, D)
    ln2_b = params["ln2_b"].astype(f32).reshape(1, D)

    weights = (ln1_w, ln1_b, w_in, b_in, w_out, b_out,
               ln2_w, ln2_b, w_fc, b_fc, w_pr, b_pr)

    xb = jnp.transpose(x, (1, 0, 2))                              # (B, L, D)

    def full_spec(arr):
        nd = arr.ndim
        return pl.BlockSpec(arr.shape, lambda b, _nd=nd: (0,) * _nd)

    vmem_limit = int(min(max(2 * _estimate_vmem_bytes(L, D, M, weights),
                             32 * 1024 * 1024),
                         64 * 1024 * 1024))

    out = pl.pallas_call(
        functools.partial(_block_kernel, n_head=n_head),
        out_shape=jax.ShapeDtypeStruct((B, L, D), x.dtype),
        grid=(B,),
        in_specs=[pl.BlockSpec((1, L, D), lambda b: (b, 0, 0))]
                 + [full_spec(w) for w in weights],
        out_specs=pl.BlockSpec((1, L, D), lambda b: (b, 0, 0)),
        compiler_params=pltpu.CompilerParams(
            dimension_semantics=("parallel",),
            vmem_limit_bytes=vmem_limit),
    )(xb, *weights)

    return jnp.transpose(out, (1, 0, 2))                          # back to (L, B, D)


# ---------------- pure-JAX reference (mirrors the PyTorch module) ----------------
def ref_block(x, p, *, n_head):
    L, B, D = x.shape
    hd = D // n_head

    def ln(v, w, b):
        mu = v.mean(-1, keepdims=True)
        var = ((v - mu) ** 2).mean(-1, keepdims=True)
        return (v - mu) / jnp.sqrt(var + LN_EPS) * w + b

    h1 = ln(x, p["ln1_w"], p["ln1_b"])
    qkv = h1 @ p["in_w"].T + p["in_b"]
    q, k, v = jnp.split(qkv, 3, axis=-1)

    def heads(t):
        return t.reshape(L, B * n_head, hd).transpose(1, 0, 2)

    q = heads(q) / math.sqrt(hd)
    k = heads(k)
    v = heads(v)
    s = jnp.einsum("hqd,hkd->hqk", q, k)
    a = jax.nn.softmax(s, axis=-1)
    o = jnp.einsum("hqk,hkd->hqd", a, v)
    o = o.transpose(1, 0, 2).reshape(L, B, D)
    attn = o @ p["out_w"].T + p["out_b"]
    if p.get("g1", None) is not None:
        attn = attn * p["g1"]
    x1 = x + attn

    h2 = ln(x1, p["ln2_w"], p["ln2_b"])
    mid = jax.nn.gelu(h2 @ p["fc_w"].T + p["fc_b"], approximate=False)
    mlp = mid @ p["pr_w"].T + p["pr_b"]
    if p.get("g2", None) is not None:
        mlp = mlp * p["g2"]
    return x1 + mlp


def init_params(key, d_model, n_head, mlp_width):
    ks = jax.random.split(key, 8)
    s = 0.02
    # ls_init_value=None in the module -> LayerScale is nn.Identity, so no
    # g1/g2 entries (the wrapper folds gammas into w_out/w_pr when present).
    return {
        "ln1_w": jnp.ones((d_model,), jnp.float32),
        "ln1_b": jnp.zeros((d_model,), jnp.float32),
        "in_w": s * jax.random.normal(ks[0], (3 * d_model, d_model), jnp.float32),
        "in_b": s * jax.random.normal(ks[1], (3 * d_model,), jnp.float32),
        "out_w": s * jax.random.normal(ks[2], (d_model, d_model), jnp.float32),
        "out_b": s * jax.random.normal(ks[3], (d_model,), jnp.float32),
        "ln2_w": jnp.ones((d_model,), jnp.float32),
        "ln2_b": jnp.zeros((d_model,), jnp.float32),
        "fc_w": s * jax.random.normal(ks[4], (mlp_width, d_model), jnp.float32),
        "fc_b": s * jax.random.normal(ks[5], (mlp_width,), jnp.float32),
        "pr_w": s * jax.random.normal(ks[6], (d_model, mlp_width), jnp.float32),
        "pr_b": s * jax.random.normal(ks[7], (d_model,), jnp.float32),
    }


if __name__ == "__main__":
    # TPU-friendly small config: D multiple of 128, L multiple of 8.
    L, B, D, H = 8, 2, 128, 4          # seq, batch, d_model, n_head
    M = int(D * 4.0)                   # mlp_width

    key = jax.random.PRNGKey(0)
    kx, kp = jax.random.split(key)
    x = jax.random.normal(kx, (L, B, D), jnp.float32)
    params = init_params(kp, D, H, M)

    out = residual_attention_block(x, params, n_head=H)
    out = jax.block_until_ready(out)

    ref = jax.block_until_ready(ref_block(x, params, n_head=H))
    np.testing.assert_allclose(np.asarray(out), np.asarray(ref), rtol=1e-2, atol=1e-2)

    print("KERNEL_OK")
</pallas_src>

<mosaic_0001>
module attributes {stable_mosaic.version = 11 : i64} {
  func.func @_block_kernel(%arg0: i32, %arg1: memref<1x8x128xf32, #tpu.memory_space<vmem>>, %arg2: memref<1x128xf32, #tpu.memory_space<vmem>>, %arg3: memref<1x128xf32, #tpu.memory_space<vmem>>, %arg4: memref<128x384xbf16, #tpu.memory_space<vmem>>, %arg5: memref<1x384xf32, #tpu.memory_space<vmem>>, %arg6: memref<128x128xbf16, #tpu.memory_space<vmem>>, %arg7: memref<1x128xf32, #tpu.memory_space<vmem>>, %arg8: memref<1x128xf32, #tpu.memory_space<vmem>>, %arg9: memref<1x128xf32, #tpu.memory_space<vmem>>, %arg10: memref<128x512xbf16, #tpu.memory_space<vmem>>, %arg11: memref<1x512xf32, #tpu.memory_space<vmem>>, %arg12: memref<512x128xbf16, #tpu.memory_space<vmem>>, %arg13: memref<1x128xf32, #tpu.memory_space<vmem>>, %arg14: memref<1x8x128xf32, #tpu.memory_space<vmem>>) attributes {dimension_semantics = [#tpu.dimension_semantics<parallel>], iteration_bounds = array<i64: 2>, scalar_prefetch = 0 : i64, scratch_operands = 0 : i64, tpu.core_type = #tpu.core_type<tc>, window_params = [{transform_indices = @transform_0, window_bounds = array<i64: 1, 8, 128>}, {pipeline_mode = #tpu.pipeline_mode<synchronous>, transform_indices = @transform_1, window_bounds = array<i64: 1, 128>}, {pipeline_mode = #tpu.pipeline_mode<synchronous>, transform_indices = @transform_2, window_bounds = array<i64: 1, 128>}, {pipeline_mode = #tpu.pipeline_mode<synchronous>, transform_indices = @transform_3, window_bounds = array<i64: 128, 384>}, {pipeline_mode = #tpu.pipeline_mode<synchronous>, transform_indices = @transform_4, window_bounds = array<i64: 1, 384>}, {pipeline_mode = #tpu.pipeline_mode<synchronous>, transform_indices = @transform_5, window_bounds = array<i64: 128, 128>}, {pipeline_mode = #tpu.pipeline_mode<synchronous>, transform_indices = @transform_6, window_bounds = array<i64: 1, 128>}, {pipeline_mode = #tpu.pipeline_mode<synchronous>, transform_indices = @transform_7, window_bounds = array<i64: 1, 128>}, {pipeline_mode = #tpu.pipeline_mode<synchronous>, transform_indices = @transform_8, window_bounds = array<i64: 1, 128>}, {pipeline_mode = #tpu.pipeline_mode<synchronous>, transform_indices = @transform_9, window_bounds = array<i64: 128, 512>}, {pipeline_mode = #tpu.pipeline_mode<synchronous>, transform_indices = @transform_10, window_bounds = array<i64: 1, 512>}, {pipeline_mode = #tpu.pipeline_mode<synchronous>, transform_indices = @transform_11, window_bounds = array<i64: 512, 128>}, {pipeline_mode = #tpu.pipeline_mode<synchronous>, transform_indices = @transform_12, window_bounds = array<i64: 1, 128>}, {transform_indices = @transform_13, window_bounds = array<i64: 1, 8, 128>}]} {
    %c0 = arith.constant 0 : index
    %c0_0 = arith.constant 0 : index
    %c0_1 = arith.constant 0 : index
    %0 = vector.load %arg1[%c0, %c0_0, %c0_1] : memref<1x8x128xf32, #tpu.memory_space<vmem>>, vector<1x8x128xf32>
    %1 = vector.shape_cast %0 : vector<1x8x128xf32> to vector<8x128xf32>
    %c0_2 = arith.constant 0 : index
    %c0_3 = arith.constant 0 : index
    %2 = vector.load %arg2[%c0_2, %c0_3] : memref<1x128xf32, #tpu.memory_space<vmem>>, vector<1x128xf32>
    %3 = vector.shape_cast %2 : vector<1x128xf32> to vector<128xf32>
    %c0_4 = arith.constant 0 : index
    %c0_5 = arith.constant 0 : index
    %4 = vector.load %arg3[%c0_4, %c0_5] : memref<1x128xf32, #tpu.memory_space<vmem>>, vector<1x128xf32>
    %5 = vector.shape_cast %4 : vector<1x128xf32> to vector<128xf32>
    %cst = arith.constant dense<0.000000e+00> : vector<8xf32>
    %6 = vector.multi_reduction <add>, %1, %cst [1] : vector<8x128xf32> to vector<8xf32>
    %7 = vector.shape_cast %6 : vector<8xf32> to vector<8x1xf32>
    %cst_6 = arith.constant 1.280000e+02 : f32
    %8 = vector.broadcast %cst_6 : f32 to vector<8x1xf32>
    %9 = arith.divf %7, %8 : vector<8x1xf32>
    %10 = vector.broadcast %9 : vector<8x1xf32> to vector<8x128xf32>
    %11 = arith.subf %1, %10 : vector<8x128xf32>
    %12 = arith.mulf %11, %11 : vector<8x128xf32>
    %cst_7 = arith.constant dense<0.000000e+00> : vector<8xf32>
    %13 = vector.multi_reduction <add>, %12, %cst_7 [1] : vector<8x128xf32> to vector<8xf32>
    %14 = vector.shape_cast %13 : vector<8xf32> to vector<8x1xf32>
    %cst_8 = arith.constant 1.280000e+02 : f32
    %15 = vector.broadcast %cst_8 : f32 to vector<8x1xf32>
    %16 = arith.divf %14, %15 : vector<8x1xf32>
    %17 = vector.broadcast %9 : vector<8x1xf32> to vector<8x128xf32>
    %18 = arith.subf %1, %17 : vector<8x128xf32>
    %cst_9 = arith.constant 9.99999974E-6 : f32
    %19 = vector.broadcast %cst_9 : f32 to vector<8x1xf32>
    %20 = arith.addf %16, %19 : vector<8x1xf32>
    %21 = math.rsqrt %20 : vector<8x1xf32>
    %22 = vector.broadcast %21 : vector<8x1xf32> to vector<8x128xf32>
    %23 = arith.mulf %18, %22 : vector<8x128xf32>
    %24 = vector.shape_cast %3 : vector<128xf32> to vector<1x128xf32>
    %25 = vector.broadcast %24 : vector<1x128xf32> to vector<8x128xf32>
    %26 = arith.mulf %23, %25 : vector<8x128xf32>
    %27 = vector.shape_cast %5 : vector<128xf32> to vector<1x128xf32>
    %28 = vector.broadcast %27 : vector<1x128xf32> to vector<8x128xf32>
    %29 = arith.addf %26, %28 : vector<8x128xf32>
    %30 = arith.truncf %29 : vector<8x128xf32> to vector<8x128xbf16>
    %c0_10 = arith.constant 0 : index
    %c0_11 = arith.constant 0 : index
    %31 = vector.load %arg4[%c0_10, %c0_11] : memref<128x384xbf16, #tpu.memory_space<vmem>>, vector<128x384xbf16>
    %cst_12 = arith.constant dense<0.000000e+00> : vector<8x384xf32>
    %32 = tpu.matmul %30, %31, %cst_12 {dimension_numbers = #tpu.dot_dimension_numbers<[1], [0], [0], [1], [0, 0, 1, 1], [], []>} : vector<8x128xbf16>, vector<128x384xbf16>, vector<8x384xf32> -> vector<8x384xf32>
    %c0_13 = arith.constant 0 : index
    %c0_14 = arith.constant 0 : index
    %33 = vector.load %arg5[%c0_13, %c0_14] : memref<1x384xf32, #tpu.memory_space<vmem>>, vector<1x384xf32>
    %34 = vector.shape_cast %33 : vector<1x384xf32> to vector<384xf32>
    %35 = vector.shape_cast %34 : vector<384xf32> to vector<1x384xf32>
    %36 = vector.broadcast %35 : vector<1x384xf32> to vector<8x384xf32>
    %37 = arith.addf %32, %36 : vector<8x384xf32>
    %38 = vector.extract_strided_slice %37 {offsets = [0, 0], sizes = [8, 128], strides = [1, 1]} : vector<8x384xf32> to vector<8x128xf32>
    %39 = arith.truncf %38 : vector<8x128xf32> to vector<8x128xbf16>
    %40 = vector.extract_strided_slice %37 {offsets = [0, 128], sizes = [8, 128], strides = [1, 1]} : vector<8x384xf32> to vector<8x128xf32>
    %41 = arith.truncf %40 : vector<8x128xf32> to vector<8x128xbf16>
    %42 = vector.extract_strided_slice %37 {offsets = [0, 256], sizes = [8, 128], strides = [1, 1]} : vector<8x384xf32> to vector<8x128xf32>
    %43 = arith.truncf %42 : vector<8x128xf32> to vector<8x128xbf16>
    %44 = vector.extract_strided_slice %39 {offsets = [0, 0], sizes = [8, 32], strides = [1, 1]} : vector<8x128xbf16> to vector<8x32xbf16>
    %45 = vector.extract_strided_slice %41 {offsets = [0, 0], sizes = [8, 32], strides = [1, 1]} : vector<8x128xbf16> to vector<8x32xbf16>
    %cst_15 = arith.constant dense<0.000000e+00> : vector<8x8xf32>
    %46 = tpu.matmul %44, %45, %cst_15 {dimension_numbers = #tpu.dot_dimension_numbers<[1], [1], [0], [0], [0, 0, 1, 0], [], []>} : vector<8x32xbf16>, vector<8x32xbf16>, vector<8x8xf32> -> vector<8x8xf32>
    %cst_16 = arith.constant dense<0xFF800000> : vector<8xf32>
    %47 = vector.multi_reduction <maximumf>, %46, %cst_16 [1] : vector<8x8xf32> to vector<8xf32>
    %48 = vector.shape_cast %47 : vector<8xf32> to vector<8x1xf32>
    %49 = vector.broadcast %48 : vector<8x1xf32> to vector<8x8xf32>
    %50 = arith.subf %46, %49 : vector<8x8xf32>
    %51 = math.exp %50 : vector<8x8xf32>
    %cst_17 = arith.constant dense<0.000000e+00> : vector<8xf32>
    %52 = vector.multi_reduction <add>, %51, %cst_17 [1] : vector<8x8xf32> to vector<8xf32>
    %53 = vector.shape_cast %52 : vector<8xf32> to vector<8x1xf32>
    %54 = tpu.reciprocal %53 {approx = true} : vector<8x1xf32> -> vector<8x1xf32>
    %55 = vector.broadcast %54 : vector<8x1xf32> to vector<8x8xf32>
    %56 = arith.mulf %51, %55 : vector<8x8xf32>
    %57 = arith.truncf %56 : vector<8x8xf32> to vector<8x8xbf16>
    %58 = vector.extract_strided_slice %43 {offsets = [0, 0], sizes = [8, 32], strides = [1, 1]} : vector<8x128xbf16> to vector<8x32xbf16>
    %cst_18 = arith.constant dense<0.000000e+00> : vector<8x32xf32>
    %59 = tpu.matmul %57, %58, %cst_18 {dimension_numbers = #tpu.dot_dimension_numbers<[1], [0], [0], [1], [0, 0, 1, 1], [], []>} : vector<8x8xbf16>, vector<8x32xbf16>, vector<8x32xf32> -> vector<8x32xf32>
    %60 = vector.extract_strided_slice %39 {offsets = [0, 32], sizes = [8, 32], strides = [1, 1]} : vector<8x128xbf16> to vector<8x32xbf16>
    %61 = vector.extract_strided_slice %41 {offsets = [0, 32], sizes = [8, 32], strides = [1, 1]} : vector<8x128xbf16> to vector<8x32xbf16>
    %cst_19 = arith.constant dense<0.000000e+00> : vector<8x8xf32>
    %62 = tpu.matmul %60, %61, %cst_19 {dimension_numbers = #tpu.dot_dimension_numbers<[1], [1], [0], [0], [0, 0, 1, 0], [], []>} : vector<8x32xbf16>, vector<8x32xbf16>, vector<8x8xf32> -> vector<8x8xf32>
    %cst_20 = arith.constant dense<0xFF800000> : vector<8xf32>
    %63 = vector.multi_reduction <maximumf>, %62, %cst_20 [1] : vector<8x8xf32> to vector<8xf32>
    %64 = vector.shape_cast %63 : vector<8xf32> to vector<8x1xf32>
    %65 = vector.broadcast %64 : vector<8x1xf32> to vector<8x8xf32>
    %66 = arith.subf %62, %65 : vector<8x8xf32>
    %67 = math.exp %66 : vector<8x8xf32>
    %cst_21 = arith.constant dense<0.000000e+00> : vector<8xf32>
    %68 = vector.multi_reduction <add>, %67, %cst_21 [1] : vector<8x8xf32> to vector<8xf32>
    %69 = vector.shape_cast %68 : vector<8xf32> to vector<8x1xf32>
    %70 = tpu.reciprocal %69 {approx = true} : vector<8x1xf32> -> vector<8x1xf32>
    %71 = vector.broadcast %70 : vector<8x1xf32> to vector<8x8xf32>
    %72 = arith.mulf %67, %71 : vector<8x8xf32>
    %73 = arith.truncf %72 : vector<8x8xf32> to vector<8x8xbf16>
    %74 = vector.extract_strided_slice %43 {offsets = [0, 32], sizes = [8, 32], strides = [1, 1]} : vector<8x128xbf16> to vector<8x32xbf16>
    %cst_22 = arith.constant dense<0.000000e+00> : vector<8x32xf32>
    %75 = tpu.matmul %73, %74, %cst_22 {dimension_numbers = #tpu.dot_dimension_numbers<[1], [0], [0], [1], [0, 0, 1, 1], [], []>} : vector<8x8xbf16>, vector<8x32xbf16>, vector<8x32xf32> -> vector<8x32xf32>
    %76 = vector.extract_strided_slice %39 {offsets = [0, 64], sizes = [8, 32], strides = [1, 1]} : vector<8x128xbf16> to vector<8x32xbf16>
    %77 = vector.extract_strided_slice %41 {offsets = [0, 64], sizes = [8, 32], strides = [1, 1]} : vector<8x128xbf16> to vector<8x32xbf16>
    %cst_23 = arith.constant dense<0.000000e+00> : vector<8x8xf32>
    %78 = tpu.matmul %76, %77, %cst_23 {dimension_numbers = #tpu.dot_dimension_numbers<[1], [1], [0], [0], [0, 0, 1, 0], [], []>} : vector<8x32xbf16>, vector<8x32xbf16>, vector<8x8xf32> -> vector<8x8xf32>
    %cst_24 = arith.constant dense<0xFF800000> : vector<8xf32>
    %79 = vector.multi_reduction <maximumf>, %78, %cst_24 [1] : vector<8x8xf32> to vector<8xf32>
    %80 = vector.shape_cast %79 : vector<8xf32> to vector<8x1xf32>
    %81 = vector.broadcast %80 : vector<8x1xf32> to vector<8x8xf32>
    %82 = arith.subf %78, %81 : vector<8x8xf32>
    %83 = math.exp %82 : vector<8x8xf32>
    %cst_25 = arith.constant dense<0.000000e+00> : vector<8xf32>
    %84 = vector.multi_reduction <add>, %83, %cst_25 [1] : vector<8x8xf32> to vector<8xf32>
    %85 = vector.shape_cast %84 : vector<8xf32> to vector<8x1xf32>
    %86 = tpu.reciprocal %85 {approx = true} : vector<8x1xf32> -> vector<8x1xf32>
    %87 = vector.broadcast %86 : vector<8x1xf32> to vector<8x8xf32>
    %88 = arith.mulf %83, %87 : vector<8x8xf32>
    %89 = arith.truncf %88 : vector<8x8xf32> to vector<8x8xbf16>
    %90 = vector.extract_strided_slice %43 {offsets = [0, 64], sizes = [8, 32], strides = [1, 1]} : vector<8x128xbf16> to vector<8x32xbf16>
    %cst_26 = arith.constant dense<0.000000e+00> : vector<8x32xf32>
    %91 = tpu.matmul %89, %90, %cst_26 {dimension_numbers = #tpu.dot_dimension_numbers<[1], [0], [0], [1], [0, 0, 1, 1], [], []>} : vector<8x8xbf16>, vector<8x32xbf16>, vector<8x32xf32> -> vector<8x32xf32>
    %92 = vector.extract_strided_slice %39 {offsets = [0, 96], sizes = [8, 32], strides = [1, 1]} : vector<8x128xbf16> to vector<8x32xbf16>
    %93 = vector.extract_strided_slice %41 {offsets = [0, 96], sizes = [8, 32], strides = [1, 1]} : vector<8x128xbf16> to vector<8x32xbf16>
    %cst_27 = arith.constant dense<0.000000e+00> : vector<8x8xf32>
    %94 = tpu.matmul %92, %93, %cst_27 {dimension_numbers = #tpu.dot_dimension_numbers<[1], [1], [0], [0], [0, 0, 1, 0], [], []>} : vector<8x32xbf16>, vector<8x32xbf16>, vector<8x8xf32> -> vector<8x8xf32>
    %cst_28 = arith.constant dense<0xFF800000> : vector<8xf32>
    %95 = vector.multi_reduction <maximumf>, %94, %cst_28 [1] : vector<8x8xf32> to vector<8xf32>
    %96 = vector.shape_cast %95 : vector<8xf32> to vector<8x1xf32>
    %97 = vector.broadcast %96 : vector<8x1xf32> to vector<8x8xf32>
    %98 = arith.subf %94, %97 : vector<8x8xf32>
    %99 = math.exp %98 : vector<8x8xf32>
    %cst_29 = arith.constant dense<0.000000e+00> : vector<8xf32>
    %100 = vector.multi_reduction <add>, %99, %cst_29 [1] : vector<8x8xf32> to vector<8xf32>
    %101 = vector.shape_cast %100 : vector<8xf32> to vector<8x1xf32>
    %102 = tpu.reciprocal %101 {approx = true} : vector<8x1xf32> -> vector<8x1xf32>
    %103 = vector.broadcast %102 : vector<8x1xf32> to vector<8x8xf32>
    %104 = arith.mulf %99, %103 : vector<8x8xf32>
    %105 = arith.truncf %104 : vector<8x8xf32> to vector<8x8xbf16>
    %106 = vector.extract_strided_slice %43 {offsets = [0, 96], sizes = [8, 32], strides = [1, 1]} : vector<8x128xbf16> to vector<8x32xbf16>
    %cst_30 = arith.constant dense<0.000000e+00> : vector<8x32xf32>
    %107 = tpu.matmul %105, %106, %cst_30 {dimension_numbers = #tpu.dot_dimension_numbers<[1], [0], [0], [1], [0, 0, 1, 1], [], []>} : vector<8x8xbf16>, vector<8x32xbf16>, vector<8x32xf32> -> vector<8x32xf32>
    %108 = tpu.concatenate %59, %75, %91, %107 in 1 : vector<8x32xf32>, vector<8x32xf32>, vector<8x32xf32>, vector<8x32xf32> -> vector<8x128xf32>
    %109 = arith.truncf %108 : vector<8x128xf32> to vector<8x128xbf16>
    %c0_31 = arith.constant 0 : index
    %c0_32 = arith.constant 0 : index
    %110 = vector.load %arg6[%c0_31, %c0_32] : memref<128x128xbf16, #tpu.memory_space<vmem>>, vector<128x128xbf16>
    %cst_33 = arith.constant dense<0.000000e+00> : vector<8x128xf32>
    %111 = tpu.matmul %109, %110, %cst_33 {dimension_numbers = #tpu.dot_dimension_numbers<[1], [0], [0], [1], [0, 0, 1, 1], [], []>} : vector<8x128xbf16>, vector<128x128xbf16>, vector<8x128xf32> -> vector<8x128xf32>
    %c0_34 = arith.constant 0 : index
    %c0_35 = arith.constant 0 : index
    %112 = vector.load %arg7[%c0_34, %c0_35] : memref<1x128xf32, #tpu.memory_space<vmem>>, vector<1x128xf32>
    %113 = vector.shape_cast %112 : vector<1x128xf32> to vector<128xf32>
    %114 = vector.shape_cast %113 : vector<128xf32> to vector<1x128xf32>
    %115 = vector.broadcast %114 : vector<1x128xf32> to vector<8x128xf32>
    %116 = arith.addf %111, %115 : vector<8x128xf32>
    %117 = arith.addf %1, %116 : vector<8x128xf32>
    %c0_36 = arith.constant 0 : index
    %c0_37 = arith.constant 0 : index
    %118 = vector.load %arg8[%c0_36, %c0_37] : memref<1x128xf32, #tpu.memory_space<vmem>>, vector<1x128xf32>
    %119 = vector.shape_cast %118 : vector<1x128xf32> to vector<128xf32>
    %c0_38 = arith.constant 0 : index
    %c0_39 = arith.constant 0 : index
    %120 = vector.load %arg9[%c0_38, %c0_39] : memref<1x128xf32, #tpu.memory_space<vmem>>, vector<1x128xf32>
    %121 = vector.shape_cast %120 : vector<1x128xf32> to vector<128xf32>
    %cst_40 = arith.constant dense<0.000000e+00> : vector<8xf32>
    %122 = vector.multi_reduction <add>, %117, %cst_40 [1] : vector<8x128xf32> to vector<8xf32>
    %123 = vector.shape_cast %122 : vector<8xf32> to vector<8x1xf32>
    %cst_41 = arith.constant 1.280000e+02 : f32
    %124 = vector.broadcast %cst_41 : f32 to vector<8x1xf32>
    %125 = arith.divf %123, %124 : vector<8x1xf32>
    %126 = vector.broadcast %125 : vector<8x1xf32> to vector<8x128xf32>
    %127 = arith.subf %117, %126 : vector<8x128xf32>
    %128 = arith.mulf %127, %127 : vector<8x128xf32>
    %cst_42 = arith.constant dense<0.000000e+00> : vector<8xf32>
    %129 = vector.multi_reduction <add>, %128, %cst_42 [1] : vector<8x128xf32> to vector<8xf32>
    %130 = vector.shape_cast %129 : vector<8xf32> to vector<8x1xf32>
    %cst_43 = arith.constant 1.280000e+02 : f32
    %131 = vector.broadcast %cst_43 : f32 to vector<8x1xf32>
    %132 = arith.divf %130, %131 : vector<8x1xf32>
    %133 = vector.broadcast %125 : vector<8x1xf32> to vector<8x128xf32>
    %134 = arith.subf %117, %133 : vector<8x128xf32>
    %cst_44 = arith.constant 9.99999974E-6 : f32
    %135 = vector.broadcast %cst_44 : f32 to vector<8x1xf32>
    %136 = arith.addf %132, %135 : vector<8x1xf32>
    %137 = math.rsqrt %136 : vector<8x1xf32>
    %138 = vector.broadcast %137 : vector<8x1xf32> to vector<8x128xf32>
    %139 = arith.mulf %134, %138 : vector<8x128xf32>
    %140 = vector.shape_cast %119 : vector<128xf32> to vector<1x128xf32>
    %141 = vector.broadcast %140 : vector<1x128xf32> to vector<8x128xf32>
    %142 = arith.mulf %139, %141 : vector<8x128xf32>
    %143 = vector.shape_cast %121 : vector<128xf32> to vector<1x128xf32>
    %144 = vector.broadcast %143 : vector<1x128xf32> to vector<8x128xf32>
    %145 = arith.addf %142, %144 : vector<8x128xf32>
    %146 = arith.truncf %145 : vector<8x128xf32> to vector<8x128xbf16>
    %c0_45 = arith.constant 0 : index
    %c0_46 = arith.constant 0 : index
    %147 = vector.load %arg10[%c0_45, %c0_46] : memref<128x512xbf16, #tpu.memory_space<vmem>>, vector<128x512xbf16>
    %cst_47 = arith.constant dense<0.000000e+00> : vector<8x512xf32>
    %148 = tpu.matmul %146, %147, %cst_47 {dimension_numbers = #tpu.dot_dimension_numbers<[1], [0], [0], [1], [0, 0, 1, 1], [], []>} : vector<8x128xbf16>, vector<128x512xbf16>, vector<8x512xf32> -> vector<8x512xf32>
    %c0_48 = arith.constant 0 : index
    %c0_49 = arith.constant 0 : index
    %149 = vector.load %arg11[%c0_48, %c0_49] : memref<1x512xf32, #tpu.memory_space<vmem>>, vector<1x512xf32>
    %150 = vector.shape_cast %149 : vector<1x512xf32> to vector<512xf32>
    %151 = vector.shape_cast %150 : vector<512xf32> to vector<1x512xf32>
    %152 = vector.broadcast %151 : vector<1x512xf32> to vector<8x512xf32>
    %153 = arith.addf %148, %152 : vector<8x512xf32>
    %cst_50 = arith.constant 5.000000e-01 : f32
    %154 = vector.broadcast %cst_50 : f32 to vector<8x512xf32>
    %155 = arith.mulf %154, %153 : vector<8x512xf32>
    %cst_51 = arith.constant 0.707106769 : f32
    %156 = vector.broadcast %cst_51 : f32 to vector<8x512xf32>
    %157 = arith.mulf %153, %156 : vector<8x512xf32>
    %cst_52 = arith.constant 0.000000e+00 : f32
    %158 = vector.broadcast %cst_52 : f32 to vector<8x512xf32>
    %159 = arith.cmpf oge, %157, %158 : vector<8x512xf32>
    %cst_53 = arith.constant 1.000000e+00 : f32
    %cst_54 = arith.constant -1.000000e+00 : f32
    %160 = vector.broadcast %cst_53 : f32 to vector<8x512xf32>
    %161 = vector.broadcast %cst_54 : f32 to vector<8x512xf32>
    %162 = arith.select %159, %160, %161 : vector<8x512xi1>, vector<8x512xf32>
    %163 = math.absf %157 : vector<8x512xf32>
    %cst_55 = arith.constant 0.327591091 : f32
    %164 = vector.broadcast %cst_55 : f32 to vector<8x512xf32>
    %165 = arith.mulf %164, %163 : vector<8x512xf32>
    %cst_56 = arith.constant 1.000000e+00 : f32
    %166 = vector.broadcast %cst_56 : f32 to vector<8x512xf32>
    %167 = arith.addf %166, %165 : vector<8x512xf32>
    %cst_57 = arith.constant 1.000000e+00 : f32
    %168 = vector.broadcast %cst_57 : f32 to vector<8x512xf32>
    %169 = arith.divf %168, %167 : vector<8x512xf32>
    %cst_58 = arith.constant 1.06140542 : f32
    %170 = vector.broadcast %cst_58 : f32 to vector<8x512xf32>
    %171 = arith.mulf %170, %169 : vector<8x512xf32>
    %cst_59 = arith.constant -1.45315206 : f32
    %172 = vector.broadcast %cst_59 : f32 to vector<8x512xf32>
    %173 = arith.addf %171, %172 : vector<8x512xf32>
    %174 = arith.mulf %173, %169 : vector<8x512xf32>
    %cst_60 = arith.constant 1.42141378 : f32
    %175 = vector.broadcast %cst_60 : f32 to vector<8x512xf32>
    %176 = arith.addf %174, %175 : vector<8x512xf32>
    %177 = arith.mulf %176, %169 : vector<8x512xf32>
    %cst_61 = arith.constant -0.284496725 : f32
    %178 = vector.broadcast %cst_61 : f32 to vector<8x512xf32>
    %179 = arith.addf %177, %178 : vector<8x512xf32>
    %180 = arith.mulf %179, %169 : vector<8x512xf32>
    %cst_62 = arith.constant 0.254829586 : f32
    %181 = vector.broadcast %cst_62 : f32 to vector<8x512xf32>
    %182 = arith.addf %180, %181 : vector<8x512xf32>
    %183 = arith.mulf %182, %169 : vector<8x512xf32>
    %cst_63 = arith.constant 0.000000e+00 : f32
    %184 = vector.broadcast %cst_63 : f32 to vector<8x512xf32>
    %185 = arith.subf %184, %163 : vector<8x512xf32>
    %186 = arith.mulf %185, %163 : vector<8x512xf32>
    %187 = math.exp %186 : vector<8x512xf32>
    %188 = arith.mulf %183, %187 : vector<8x512xf32>
    %cst_64 = arith.constant 1.000000e+00 : f32
    %189 = vector.broadcast %cst_64 : f32 to vector<8x512xf32>
    %190 = arith.subf %189, %188 : vector<8x512xf32>
    %191 = arith.mulf %162, %190 : vector<8x512xf32>
    %cst_65 = arith.constant 1.000000e+00 : f32
    %192 = vector.broadcast %cst_65 : f32 to vector<8x512xf32>
    %193 = arith.addf %192, %191 : vector<8x512xf32>
    %194 = arith.mulf %155, %193 : vector<8x512xf32>
    %195 = arith.truncf %194 : vector<8x512xf32> to vector<8x512xbf16>
    %c0_66 = arith.constant 0 : index
    %c0_67 = arith.constant 0 : index
    %196 = vector.load %arg12[%c0_66, %c0_67] : memref<512x128xbf16, #tpu.memory_space<vmem>>, vector<512x128xbf16>
    %cst_68 = arith.constant dense<0.000000e+00> : vector<8x128xf32>
    %197 = tpu.matmul %195, %196, %cst_68 {dimension_numbers = #tpu.dot_dimension_numbers<[1], [0], [0], [1], [0, 0, 1, 1], [], []>} : vector<8x512xbf16>, vector<512x128xbf16>, vector<8x128xf32> -> vector<8x128xf32>
    %c0_69 = arith.constant 0 : index
    %c0_70 = arith.constant 0 : index
    %198 = vector.load %arg13[%c0_69, %c0_70] : memref<1x128xf32, #tpu.memory_space<vmem>>, vector<1x128xf32>
    %199 = vector.shape_cast %198 : vector<1x128xf32> to vector<128xf32>
    %200 = vector.shape_cast %199 : vector<128xf32> to vector<1x128xf32>
    %201 = vector.broadcast %200 : vector<1x128xf32> to vector<8x128xf32>
    %202 = arith.addf %197, %201 : vector<8x128xf32>
    %203 = arith.addf %117, %202 : vector<8x128xf32>
    %c0_71 = arith.constant 0 : index
    %c0_72 = arith.constant 0 : index
    %c0_73 = arith.constant 0 : index
    %204 = vector.load %arg14[%c0_71, %c0_72, %c0_73] : memref<1x8x128xf32, #tpu.memory_space<vmem>>, vector<1x8x128xf32>
    %205 = vector.shape_cast %204 : vector<1x8x128xf32> to vector<8x128xf32>
    %206 = vector.shape_cast %203 : vector<8x128xf32> to vector<1x8x128xf32>
    tpu.vector_store %arg14[%c0_71, %c0_72, %c0_73], %206 {strides = array<i32>} : memref<1x8x128xf32, #tpu.memory_space<vmem>>, vector<1x8x128xf32>,
    return
  }
  func.func @transform_0(%arg0: i32) -> (i32, i32, i32) {
    %c0_i32 = arith.constant 0 : i32
    %c0_i32_0 = arith.constant 0 : i32
    %c0_i32_1 = arith.constant 0 : i32
    return %arg0, %c0_i32, %c0_i32_0 : i32, i32, i32
  }
  func.func @transform_1(%arg0: i32) -> (i32, i32) {
    %c0_i32 = arith.constant 0 : i32
    %c0_i32_0 = arith.constant 0 : i32
    %c0_i32_1 = arith.constant 0 : i32
    return %c0_i32, %c0_i32_0 : i32, i32
  }
  func.func @transform_2(%arg0: i32) -> (i32, i32) {
    %c0_i32 = arith.constant 0 : i32
    %c0_i32_0 = arith.constant 0 : i32
    %c0_i32_1 = arith.constant 0 : i32
    return %c0_i32, %c0_i32_0 : i32, i32
  }
  func.func @transform_3(%arg0: i32) -> (i32, i32) {
    %c0_i32 = arith.constant 0 : i32
    %c0_i32_0 = arith.constant 0 : i32
    %c0_i32_1 = arith.constant 0 : i32
    return %c0_i32, %c0_i32_0 : i32, i32
  }
  func.func @transform_4(%arg0: i32) -> (i32, i32) {
    %c0_i32 = arith.constant 0 : i32
    %c0_i32_0 = arith.constant 0 : i32
    %c0_i32_1 = arith.constant 0 : i32
    return %c0_i32, %c0_i32_0 : i32, i32
  }
  func.func @transform_5(%arg0: i32) -> (i32, i32) {
    %c0_i32 = arith.constant 0 : i32
    %c0_i32_0 = arith.constant 0 : i32
    %c0_i32_1 = arith.constant 0 : i32
    return %c0_i32, %c0_i32_0 : i32, i32
  }
  func.func @transform_6(%arg0: i32) -> (i32, i32) {
    %c0_i32 = arith.constant 0 : i32
    %c0_i32_0 = arith.constant 0 : i32
    %c0_i32_1 = arith.constant 0 : i32
    return %c0_i32, %c0_i32_0 : i32, i32
  }
  func.func @transform_7(%arg0: i32) -> (i32, i32) {
    %c0_i32 = arith.constant 0 : i32
    %c0_i32_0 = arith.constant 0 : i32
    %c0_i32_1 = arith.constant 0 : i32
    return %c0_i32, %c0_i32_0 : i32, i32
  }
  func.func @transform_8(%arg0: i32) -> (i32, i32) {
    %c0_i32 = arith.constant 0 : i32
    %c0_i32_0 = arith.constant 0 : i32
    %c0_i32_1 = arith.constant 0 : i32
    return %c0_i32, %c0_i32_0 : i32, i32
  }
  func.func @transform_9(%arg0: i32) -> (i32, i32) {
    %c0_i32 = arith.constant 0 : i32
    %c0_i32_0 = arith.constant 0 : i32
    %c0_i32_1 = arith.constant 0 : i32
    return %c0_i32, %c0_i32_0 : i32, i32
  }
  func.func @transform_10(%arg0: i32) -> (i32, i32) {
    %c0_i32 = arith.constant 0 : i32
    %c0_i32_0 = arith.constant 0 : i32
    %c0_i32_1 = arith.constant 0 : i32
    return %c0_i32, %c0_i32_0 : i32, i32
  }
  func.func @transform_11(%arg0: i32) -> (i32, i32) {
    %c0_i32 = arith.constant 0 : i32
    %c0_i32_0 = arith.constant 0 : i32
    %c0_i32_1 = arith.constant 0 : i32
    return %c0_i32, %c0_i32_0 : i32, i32
  }
  func.func @transform_12(%arg0: i32) -> (i32, i32) {
    %c0_i32 = arith.constant 0 : i32
    %c0_i32_0 = arith.constant 0 : i32
    %c0_i32_1 = arith.constant 0 : i32
    return %c0_i32, %c0_i32_0 : i32, i32
  }
  func.func @transform_13(%arg0: i32) -> (i32, i32, i32) {
    %c0_i32 = arith.constant 0 : i32
    %c0_i32_0 = arith.constant 0 : i32
    %c0_i32_1 = arith.constant 0 : i32
    return %arg0, %c0_i32, %c0_i32_0 : i32, i32, i32
  }
}

</mosaic_0001>

<llo_original>
// kernel: tpu_custom_call.1
$region0: #{tpu_custom_call.1}
  #allocation0 [shape = 'u32[]', space=smem, size = 0x4, offset = 0x4, fixed_abs, tag = 'smem constant byte address 0x4 - core index']
  #allocation1 [shape = 'u32[144,128]{1,0:T(1,128)}', space=vmem, size = 0x12000, scoped, tag = 'internal scratch']
  %s0 = inlined_call_operand.hbm [shape: f32[2,8,128], index: 0, kind: input, shape index: {}]
  %s1 = inlined_call_operand.hbm [shape: f32[1,128], index: 1, kind: input, shape index: {}]
  %s2 = inlined_call_operand.hbm [shape: f32[1,128], index: 2, kind: input, shape index: {}]
  %s3 = inlined_call_operand.hbm [shape: bf16[128,384], index: 3, kind: input, shape index: {}]
  %s4 = inlined_call_operand.vmem [shape: f32[1,384], index: 4, kind: input, shape index: {}]
  %s5 = inlined_call_operand.hbm [shape: bf16[128,128], index: 5, kind: input, shape index: {}]
  %s6 = inlined_call_operand.vmem [shape: f32[1,128], index: 6, kind: input, shape index: {}]
  %s7 = inlined_call_operand.vmem [shape: f32[1,128], index: 7, kind: input, shape index: {}]
  %s8 = inlined_call_operand.vmem [shape: f32[1,128], index: 8, kind: input, shape index: {}]
  %s9 = inlined_call_operand.hbm [shape: bf16[128,512], index: 9, kind: input, shape index: {}]
  %s10 = inlined_call_operand.vmem [shape: f32[1,512], index: 10, kind: input, shape index: {}]
  %s11 = inlined_call_operand.hbm [shape: bf16[512,128], index: 11, kind: input, shape index: {}]
  %s12 = inlined_call_operand.vmem [shape: f32[1,128], index: 12, kind: input, shape index: {}]
  %s13 = inlined_call_operand.hbm [shape: f32[2,8,128], index: 13, kind: output, shape index: {}]
  %s14 = sld [smem:[#allocation0]]
  $region113: #{tpu_custom_call.1} parent=0
    _
  %s16 = ssub.s32 1, %s14
  %s17 = scalar_select 0, %s16, %s14
  $region1: #{tpu_custom_call.1} parent=0
    #allocation2 [shape = 'u8[8192]{0}', space=vmem, size = 0x2000, scoped, tag = 'input window, operand 0']
    #allocation3 [shape = 's32[2]{0}', space=sflag, size = 0x8, scoped, tag = 'scoped memory for tpu_custom_call.1']
    #allocation4 [shape = 's32[2]{0}', space=sflag, size = 0x8, scoped, tag = 'scoped memory for tpu_custom_call.1']
    #allocation5 [shape = 'u8[512]{0}', space=vmem, size = 0x400, scoped, tag = 'input window, operand 1, single buffered']
    #allocation6 [shape = 's32[1]{0}', space=sflag, size = 0x4, scoped, tag = 'scoped memory for tpu_custom_call.1']
    #allocation7 [shape = 'u8[512]{0}', space=vmem, size = 0x400, scoped, tag = 'input window, operand 2, single buffered']
    #allocation8 [shape = 'u8[98304]{0}', space=vmem, size = 0x18000, scoped, tag = 'input window, operand 3, single buffered']
    #allocation9 [shape = 's32[1]{0}', space=sflag, size = 0x4, scoped, tag = 'scoped memory for tpu_custom_call.1']
    #allocation10 [shape = 'u8[32768]{0}', space=vmem, size = 0x8000, scoped, tag = 'input window, operand 5, single buffered']
    #allocation11 [shape = 'u8[131072]{0}', space=vmem, size = 0x20000, scoped, tag = 'input window, operand 9, single buffered']
    #allocation12 [shape = 's32[1]{0}', space=sflag, size = 0x4, scoped, tag = 'scoped memory for tpu_custom_call.1']
    #allocation13 [shape = 'u8[131072]{0}', space=vmem, size = 0x20000, scoped, tag = 'input window, operand 11, single buffered']
    #allocation14 [shape = 'u8[8192]{0}', space=vmem, size = 0x2000, scoped, tag = 'output window, operand 0']
    %18 = vsyncpa [#allocation3], 0
    %s19 = scalar_lea.sflag [#allocation3], 1
    %20 = vsyncpa %s19, 0
    %21 = vsyncpa [#allocation6], 0
    %22 = vsyncpa [#allocation9], 0
    %23 = vsyncpa [#allocation12], 0
    %24 = vsyncpa [#allocation4], 0
    %s25 = scalar_lea.sflag [#allocation4], 1
    %26 = vsyncpa %s25, 0
    loop: start=0, step=1, limit=4
    $region2: #{tpu_custom_call.1} parent=1 // loop_pre_header
      _
    $region3: #{tpu_custom_call.1} parent=1 // loop_header
      %s28 = sphi 0, %s32
      %p29 = scmp.ge.s32.totalorder %s28, 4
      %s38 = sphi 0, %s40
      %s41 = sphi 0, %s38
      %s42 = sphi 0, %s41
      %s58 = sphi 0, %s42
      %s62 = sphi 0, %s62
      %s64 = sphi 0, %s62
      %s65 = sphi 0, %s64
      %s79 = sphi 0, %s65
      %s83 = sphi 0, %s83
      %s85 = sphi 0, %s83
      %s86 = sphi 0, %s85
      %s100 = sphi 0, %s86
      %s104 = sphi 0, %s104
      %s106 = sphi 0, %s104
      %s107 = sphi 0, %s106
      %s121 = sphi 0, %s107
      %s125 = sphi 0, %s125
      %s127 = sphi 0, %s125
      %s128 = sphi 0, %s127
      %s142 = sphi 0, %s128
      %s146 = sphi 0, %s146
      %s148 = sphi 0, %s146
      %s149 = sphi 0, %s148
      %s163 = sphi 0, %s149
      %s167 = sphi 0, %s167
      %s169 = sphi 0, %s167
      %s170 = sphi 0, %s169
      %s184 = sphi 0, %s170
      %s188 = sphi 0, %s188
      %s190 = sphi 0, %s188
      %s191 = sphi 0, %s190
      %s205 = sphi 0, %s191
      %s209 = sphi 0, %s209
      %s211 = sphi 0, %s209
      %s212 = sphi 0, %s211
      %s226 = sphi 0, %s212
      %s230 = sphi 0, %s230
      %s232 = sphi 0, %s230
      %s233 = sphi 0, %s232
      %s247 = sphi 0, %s233
      %s251 = sphi 0, %s251
      %s253 = sphi 0, %s251
      %s254 = sphi 0, %s253
      %s268 = sphi 0, %s254
      %s272 = sphi 0, %s272
      %s274 = sphi 0, %s272
      %s275 = sphi 0, %s274
      %s289 = sphi 0, %s275
      %s293 = sphi 0, %s293
      %s295 = sphi 0, %s293
      %s296 = sphi 0, %s295
      %s310 = sphi 0, %s296
      %s316 = sphi 0, %s318
      %s319 = sphi 0, %s316
      %s320 = sphi 0, %s319
      %s336 = sphi 0, %s320
    $region4: #{tpu_custom_call.1} parent=1 // loop_header_branch
      %31 = sbr.rel (%p29) target = $region8
    $region5: #{tpu_custom_call.1} parent=1 // loop_body
      %s33 = ssub.s32 %s28, 1
      %s34 = ssub.s32 %s28, 2
      %s35 = sadd.s32 %s28, 1
      %s36 = ssub.s32 %s28, %s35
      %p37 = scmp.eq.s32.totalorder %s36, 0
      %s39 = sadd.s32 %s38, 1
      %s40 = scalar_select %p37, %s38, %s39
      %p43 = pneg %p37
      %p44 = scmp.eq.s32.totalorder %s28, 1
      %p45 = por %p43, %p44
      %p46 = scmp.ne.s32.totalorder %s38, %s41
      %p47 = scmp.eq.s32.totalorder %s28, 0
      %p48 = por %p46, %p47
      %p49 = scmp.ne.s32.totalorder %s38, %s41
      %p50 = scmp.eq.s32.totalorder %s33, 1
      %p51 = por %p49, %p50
      %p52 = scmp.ne.s32.totalorder %s41, %s42
      %p53 = scmp.eq.s32.totalorder %s33, 0
      %p54 = por %p52, %p53
      %p55 = scmp.ne.s32.totalorder %s41, %s42
      %p56 = scmp.eq.s32.totalorder %s34, 1
      %p57 = por %p55, %p56
      %p59 = scmp.ne.s32.totalorder %s42, %s58
      %p60 = scmp.eq.s32.totalorder %s34, 0
      %p61 = por %p59, %p60
      %s63 = sadd.s32 %s62, 1
      %p66 = scmp.eq.s32.totalorder %s28, 1
      %p67 = scmp.ne.s32.totalorder %s62, %s64
      %p68 = scmp.eq.s32.totalorder %s28, 0
      %p69 = por %p67, %p68
      %p70 = scmp.ne.s32.totalorder %s62, %s64
      %p71 = scmp.eq.s32.totalorder %s33, 1
      %p72 = por %p70, %p71
      %p73 = scmp.ne.s32.totalorder %s64, %s65
      %p74 = scmp.eq.s32.totalorder %s33, 0
      %p75 = por %p73, %p74
      %p76 = scmp.ne.s32.totalorder %s64, %s65
      %p77 = scmp.eq.s32.totalorder %s34, 1
      %p78 = por %p76, %p77
      %p80 = scmp.ne.s32.totalorder %s65, %s79
      %p81 = scmp.eq.s32.totalorder %s34, 0
      %p82 = por %p80, %p81
      %s84 = sadd.s32 %s83, 1
      %p87 = scmp.eq.s32.totalorder %s28, 1
      %p88 = scmp.ne.s32.totalorder %s83, %s85
      %p89 = scmp.eq.s32.totalorder %s28, 0
      %p90 = por %p88, %p89
      %p91 = scmp.ne.s32.totalorder %s83, %s85
      %p92 = scmp.eq.s32.totalorder %s33, 1
      %p93 = por %p91, %p92
      %p94 = scmp.ne.s32.totalorder %s85, %s86
      %p95 = scmp.eq.s32.totalorder %s33, 0
      %p96 = por %p94, %p95
      %p97 = scmp.ne.s32.totalorder %s85, %s86
      %p98 = scmp.eq.s32.totalorder %s34, 1
      %p99 = por %p97, %p98
      %p101 = scmp.ne.s32.totalorder %s86, %s100
      %p102 = scmp.eq.s32.totalorder %s34, 0
      %p103 = por %p101, %p102
      %s105 = sadd.s32 %s104, 1
      %p108 = scmp.eq.s32.totalorder %s28, 1
      %p109 = scmp.ne.s32.totalorder %s104, %s106
      %p110 = scmp.eq.s32.totalorder %s28, 0
      %p111 = por %p109, %p110
      %p112 = scmp.ne.s32.totalorder %s104, %s106
      %p113 = scmp.eq.s32.totalorder %s33, 1
      %p114 = por %p112, %p113
      %p115 = scmp.ne.s32.totalorder %s106, %s107
      %p116 = scmp.eq.s32.totalorder %s33, 0
      %p117 = por %p115, %p116
      %p118 = scmp.ne.s32.totalorder %s106, %s107
      %p119 = scmp.eq.s32.totalorder %s34, 1
      %p120 = por %p118, %p119
      %p122 = scmp.ne.s32.totalorder %s107, %s121
      %p123 = scmp.eq.s32.totalorder %s34, 0
      %p124 = por %p122, %p123
      %s126 = sadd.s32 %s125, 1
      %p129 = scmp.eq.s32.totalorder %s28, 1
      %p130 = scmp.ne.s32.totalorder %s125, %s127
      %p131 = scmp.eq.s32.totalorder %s28, 0
      %p132 = por %p130, %p131
      %p133 = scmp.ne.s32.totalorder %s125, %s127
      %p134 = scmp.eq.s32.totalorder %s33, 1
      %p135 = por %p133, %p134
      %p136 = scmp.ne.s32.totalorder %s127, %s128
      %p137 = scmp.eq.s32.totalorder %s33, 0
      %p138 = por %p136, %p137
      %p139 = scmp.ne.s32.totalorder %s127, %s128
      %p140 = scmp.eq.s32.totalorder %s34, 1
      %p141 = por %p139, %p140
      %p143 = scmp.ne.s32.totalorder %s128, %s142
      %p144 = scmp.eq.s32.totalorder %s34, 0
      %p145 = por %p143, %p144
      %s147 = sadd.s32 %s146, 1
      %p150 = scmp.eq.s32.totalorder %s28, 1
      %p151 = scmp.ne.s32.totalorder %s146, %s148
      %p152 = scmp.eq.s32.totalorder %s28, 0
      %p153 = por %p151, %p152
      %p154 = scmp.ne.s32.totalorder %s146, %s148
      %p155 = scmp.eq.s32.totalorder %s33, 1
      %p156 = por %p154, %p155
      %p157 = scmp.ne.s32.totalorder %s148, %s149
      %p158 = scmp.eq.s32.totalorder %s33, 0
      %p159 = por %p157, %p158
      %p160 = scmp.ne.s32.totalorder %s148, %s149
      %p161 = scmp.eq.s32.totalorder %s34, 1
      %p162 = por %p160, %p161
      %p164 = scmp.ne.s32.totalorder %s149, %s163
      %p165 = scmp.eq.s32.totalorder %s34, 0
      %p166 = por %p164, %p165
      %s168 = sadd.s32 %s167, 1
      %p171 = scmp.eq.s32.totalorder %s28, 1
      %p172 = scmp.ne.s32.totalorder %s167, %s169
      %p173 = scmp.eq.s32.totalorder %s28, 0
      %p174 = por %p172, %p173
      %p175 = scmp.ne.s32.totalorder %s167, %s169
      %p176 = scmp.eq.s32.totalorder %s33, 1
      %p177 = por %p175, %p176
      %p178 = scmp.ne.s32.totalorder %s169, %s170
      %p179 = scmp.eq.s32.totalorder %s33, 0
      %p180 = por %p178, %p179
      %p181 = scmp.ne.s32.totalorder %s169, %s170
      %p182 = scmp.eq.s32.totalorder %s34, 1
      %p183 = por %p181, %p182
      %p185 = scmp.ne.s32.totalorder %s170, %s184
      %p186 = scmp.eq.s32.totalorder %s34, 0
      %p187 = por %p185, %p186
      %s189 = sadd.s32 %s188, 1
      %p192 = scmp.eq.s32.totalorder %s28, 1
      %p193 = scmp.ne.s32.totalorder %s188, %s190
      %p194 = scmp.eq.s32.totalorder %s28, 0
      %p195 = por %p193, %p194
      %p196 = scmp.ne.s32.totalorder %s188, %s190
      %p197 = scmp.eq.s32.totalorder %s33, 1
      %p198 = por %p196, %p197
      %p199 = scmp.ne.s32.totalorder %s190, %s191
      %p200 = scmp.eq.s32.totalorder %s33, 0
      %p201 = por %p199, %p200
      %p202 = scmp.ne.s32.totalorder %s190, %s191
      %p203 = scmp.eq.s32.totalorder %s34, 1
      %p204 = por %p202, %p203
      %p206 = scmp.ne.s32.totalorder %s191, %s205
      %p207 = scmp.eq.s32.totalorder %s34, 0
      %p208 = por %p206, %p207
      %s210 = sadd.s32 %s209, 1
      %p213 = scmp.eq.s32.totalorder %s28, 1
      %p214 = scmp.ne.s32.totalorder %s209, %s211
      %p215 = scmp.eq.s32.totalorder %s28, 0
      %p216 = por %p214, %p215
      %p217 = scmp.ne.s32.totalorder %s209, %s211
      %p218 = scmp.eq.s32.totalorder %s33, 1
      %p219 = por %p217, %p218
      %p220 = scmp.ne.s32.totalorder %s211, %s212
      %p221 = scmp.eq.s32.totalorder %s33, 0
      %p222 = por %p220, %p221
      %p223 = scmp.ne.s32.totalorder %s211, %s212
      %p224 = scmp.eq.s32.totalorder %s34, 1
      %p225 = por %p223, %p224
      %p227 = scmp.ne.s32.totalorder %s212, %s226
      %p228 = scmp.eq.s32.totalorder %s34, 0
      %p229 = por %p227, %p228
      %s231 = sadd.s32 %s230, 1
      %p234 = scmp.eq.s32.totalorder %s28, 1
      %p235 = scmp.ne.s32.totalorder %s230, %s232
      %p236 = scmp.eq.s32.totalorder %s28, 0
      %p237 = por %p235, %p236
      %p238 = scmp.ne.s32.totalorder %s230, %s232
      %p239 = scmp.eq.s32.totalorder %s33, 1
      %p240 = por %p238, %p239
      %p241 = scmp.ne.s32.totalorder %s232, %s233
      %p242 = scmp.eq.s32.totalorder %s33, 0
      %p243 = por %p241, %p242
      %p244 = scmp.ne.s32.totalorder %s232, %s233
      %p245 = scmp.eq.s32.totalorder %s34, 1
      %p246 = por %p244, %p245
      %p248 = scmp.ne.s32.totalorder %s233, %s247
      %p249 = scmp.eq.s32.totalorder %s34, 0
      %p250 = por %p248, %p249
      %s252 = sadd.s32 %s251, 1
      %p255 = scmp.eq.s32.totalorder %s28, 1
      %p256 = scmp.ne.s32.totalorder %s251, %s253
      %p257 = scmp.eq.s32.totalorder %s28, 0
      %p258 = por %p256, %p257
      %p259 = scmp.ne.s32.totalorder %s251, %s253
      %p260 = scmp.eq.s32.totalorder %s33, 1
      %p261 = por %p259, %p260
      %p262 = scmp.ne.s32.totalorder %s253, %s254
      %p263 = scmp.eq.s32.totalorder %s33, 0
      %p264 = por %p262, %p263
      %p265 = scmp.ne.s32.totalorder %s253, %s254
      %p266 = scmp.eq.s32.totalorder %s34, 1
      %p267 = por %p265, %p266
      %p269 = scmp.ne.s32.totalorder %s254, %s268
      %p270 = scmp.eq.s32.totalorder %s34, 0
      %p271 = por %p269, %p270
      %s273 = sadd.s32 %s272, 1
      %p276 = scmp.eq.s32.totalorder %s28, 1
      %p277 = scmp.ne.s32.totalorder %s272, %s274
      %p278 = scmp.eq.s32.totalorder %s28, 0
      %p279 = por %p277, %p278
      %p280 = scmp.ne.s32.totalorder %s272, %s274
      %p281 = scmp.eq.s32.totalorder %s33, 1
      %p282 = por %p280, %p281
      %p283 = scmp.ne.s32.totalorder %s274, %s275
      %p284 = scmp.eq.s32.totalorder %s33, 0
      %p285 = por %p283, %p284
      %p286 = scmp.ne.s32.totalorder %s274, %s275
      %p287 = scmp.eq.s32.totalorder %s34, 1
      %p288 = por %p286, %p287
      %p290 = scmp.ne.s32.totalorder %s275, %s289
      %p291 = scmp.eq.s32.totalorder %s34, 0
      %p292 = por %p290, %p291
      %s294 = sadd.s32 %s293, 1
      %p297 = scmp.eq.s32.totalorder %s28, 1
      %p298 = scmp.ne.s32.totalorder %s293, %s295
      %p299 = scmp.eq.s32.totalorder %s28, 0
      %p300 = por %p298, %p299
      %p301 = scmp.ne.s32.totalorder %s293, %s295
      %p302 = scmp.eq.s32.totalorder %s33, 1
      %p303 = por %p301, %p302
      %p304 = scmp.ne.s32.totalorder %s295, %s296
      %p305 = scmp.eq.s32.totalorder %s33, 0
      %p306 = por %p304, %p305
      %p307 = scmp.ne.s32.totalorder %s295, %s296
      %p308 = scmp.eq.s32.totalorder %s34, 1
      %p309 = por %p307, %p308
      %p311 = scmp.ne.s32.totalorder %s296, %s310
      %p312 = scmp.eq.s32.totalorder %s34, 0
      %p313 = por %p311, %p312
      %s314 = ssub.s32 %s28, %s35
      %p315 = scmp.eq.s32.totalorder %s314, 0
      %s317 = sadd.s32 %s316, 1
      %s318 = scalar_select %p315, %s316, %s317
      %p321 = pneg %p315
      %p322 = scmp.eq.s32.totalorder %s28, 1
      %p323 = por %p321, %p322
      %p324 = scmp.ne.s32.totalorder %s316, %s319
      %p325 = scmp.eq.s32.totalorder %s28, 0
      %p326 = por %p324, %p325
      %p327 = scmp.ne.s32.totalorder %s316, %s319
      %p328 = scmp.eq.s32.totalorder %s33, 1
      %p329 = por %p327, %p328
      %p330 = scmp.ne.s32.totalorder %s319, %s320
      %p331 = scmp.eq.s32.totalorder %s33, 0
      %p332 = por %p330, %p331
      %p333 = scmp.ne.s32.totalorder %s319, %s320
      %p334 = scmp.eq.s32.totalorder %s34, 1
      %p335 = por %p333, %p334
      %p337 = scmp.ne.s32.totalorder %s320, %s336
      %p338 = scmp.eq.s32.totalorder %s34, 0
      %p339 = por %p337, %p338
      %p340 = scmp.le.s32.totalorder 1, %s28
      %p341 = scmp.lt.s32.totalorder %s28, 3
      %p342 = pnand %p340, %p341
      %p343 = pneg %p342
      // Predicated region
      $region9: #{tpu_custom_call.1} parent=5 // pred_check
        _
      $region10: #{tpu_custom_call.1} parent=5 // pred_check_branch
        %345 = sbr.rel (%p342) target = $region12
      $region11: #{tpu_custom_call.1} parent=5 // pred_region
        %s346 = ssub.s32 %s28, 1
        // Predicated region
        $region13: #{tpu_custom_call.1} parent=11 // pred_check
          %p347 = pneg %p75
        $region14: #{tpu_custom_call.1} parent=11 // pred_check_branch
          %349 = sbr.rel (%p347) target = $region16
        $region15: #{tpu_custom_call.1} parent=11 // pred_region
          %s351 = ssub.s32 16, 16
          %352 = vsyncadd [#allocation6], %s351
          %s354 = sshll.u32 [#allocation5], 4
          %s355 = int_to_ptr.vmem [resolvable:$true] %s354
          %357 = dma.hbm_to_vmem [thread:$0]  %s1, 16, %s355, [#allocation6]
        $region16: #{tpu_custom_call.1} parent=11 // pred_fallthru
          _
        // Predicated region
        $region17: #{tpu_custom_call.1} parent=11 // pred_check
          %p358 = pneg %p96
        $region18: #{tpu_custom_call.1} parent=11 // pred_check_branch
          %360 = sbr.rel (%p358) target = $region20
        $region19: #{tpu_custom_call.1} parent=11 // pred_region
          %s362 = ssub.s32 16, 16
          %363 = vsyncadd [#allocation6], %s362
          %s365 = sshll.u32 [#allocation7], 4
          %s366 = int_to_ptr.vmem [resolvable:$true] %s365
          %368 = dma.hbm_to_vmem [thread:$0]  %s2, 16, %s366, [#allocation6]
        $region20: #{tpu_custom_call.1} parent=11 // pred_fallthru
          _
        // Predicated region
        $region21: #{tpu_custom_call.1} parent=11 // pred_check
          %p369 = pneg %p117
        $region22: #{tpu_custom_call.1} parent=11 // pred_check_branch
          %371 = sbr.rel (%p369) target = $region24
        $region23: #{tpu_custom_call.1} parent=11 // pred_region
          %s373 = ssub.s32 3072, 3072
          %374 = vsyncadd [#allocation9], %s373
          %s375 = sshll.u32 [#allocation8], 4
          %s376 = int_to_ptr.vmem [resolvable:$true] %s375
          %381 = dma.hbm_to_vmem [thread:$0]  %s3, 3072, %s376, [#allocation9], 192, 192, 12
        $region24: #{tpu_custom_call.1} parent=11 // pred_fallthru
          _
        // Predicated region
        $region25: #{tpu_custom_call.1} parent=11 // pred_check
          %p382 = pneg %p138
        $region26: #{tpu_custom_call.1} parent=11 // pred_check_branch
          %384 = sbr.rel (%p382) target = $region28
        $region27: #{tpu_custom_call.1} parent=11 // pred_region
          _
        $region28: #{tpu_custom_call.1} parent=11 // pred_fallthru
          _
        // Predicated region
        $region29: #{tpu_custom_call.1} parent=11 // pred_check
          %p385 = pneg %p159
        $region30: #{tpu_custom_call.1} parent=11 // pred_check_branch
          %387 = sbr.rel (%p385) target = $region32
        $region31: #{tpu_custom_call.1} parent=11 // pred_region
          %s389 = ssub.s32 1024, 1024
          %390 = vsyncadd [#allocation9], %s389
          %s391 = sshll.u32 [#allocation10], 4
          %s392 = int_to_ptr.vmem [resolvable:$true] %s391
          %397 = dma.hbm_to_vmem [thread:$0]  %s5, 1024, %s392, [#allocation9], 64, 64, 4
        $region32: #{tpu_custom_call.1} parent=11 // pred_fallthru
          _
        // Predicated region
        $region33: #{tpu_custom_call.1} parent=11 // pred_check
          %p398 = pneg %p180
        $region34: #{tpu_custom_call.1} parent=11 // pred_check_branch
          %400 = sbr.rel (%p398) target = $region36
        $region35: #{tpu_custom_call.1} parent=11 // pred_region
          _
        $region36: #{tpu_custom_call.1} parent=11 // pred_fallthru
          _
        // Predicated region
        $region37: #{tpu_custom_call.1} parent=11 // pred_check
          %p401 = pneg %p201
        $region38: #{tpu_custom_call.1} parent=11 // pred_check_branch
          %403 = sbr.rel (%p401) target = $region40
        $region39: #{tpu_custom_call.1} parent=11 // pred_region
          _
        $region40: #{tpu_custom_call.1} parent=11 // pred_fallthru
          _
        // Predicated region
        $region41: #{tpu_custom_call.1} parent=11 // pred_check
          %p404 = pneg %p222
        $region42: #{tpu_custom_call.1} parent=11 // pred_check_branch
          %406 = sbr.rel (%p404) target = $region44
        $region43: #{tpu_custom_call.1} parent=11 // pred_region
          _
        $region44: #{tpu_custom_call.1} parent=11 // pred_fallthru
          _
        // Predicated region
        $region45: #{tpu_custom_call.1} parent=11 // pred_check
          %p407 = pneg %p243
        $region46: #{tpu_custom_call.1} parent=11 // pred_check_branch
          %409 = sbr.rel (%p407) target = $region48
        $region47: #{tpu_custom_call.1} parent=11 // pred_region
          %s411 = ssub.s32 4096, 4096
          %412 = vsyncadd [#allocation12], %s411
          %s413 = sshll.u32 [#allocation11], 4
          %s414 = int_to_ptr.vmem [resolvable:$true] %s413
          %419 = dma.hbm_to_vmem [thread:$0]  %s9, 4096, %s414, [#allocation12], 256, 256, 16
        $region48: #{tpu_custom_call.1} parent=11 // pred_fallthru
          _
        // Predicated region
        $region49: #{tpu_custom_call.1} parent=11 // pred_check
          %p420 = pneg %p264
        $region50: #{tpu_custom_call.1} parent=11 // pred_check_branch
          %422 = sbr.rel (%p420) target = $region52
        $region51: #{tpu_custom_call.1} parent=11 // pred_region
          _
        $region52: #{tpu_custom_call.1} parent=11 // pred_fallthru
          _
        // Predicated region
        $region53: #{tpu_custom_call.1} parent=11 // pred_check
          %p423 = pneg %p285
        $region54: #{tpu_custom_call.1} parent=11 // pred_check_branch
          %425 = sbr.rel (%p423) target = $region56
        $region55: #{tpu_custom_call.1} parent=11 // pred_region
          %s427 = ssub.s32 4096, 4096
          %428 = vsyncadd [#allocation12], %s427
          %s429 = sshll.u32 [#allocation13], 4
          %s430 = int_to_ptr.vmem [resolvable:$true] %s429
          %435 = dma.hbm_to_vmem [thread:$0]  %s11, 4096, %s430, [#allocation12], 64, 64, 4
        $region56: #{tpu_custom_call.1} parent=11 // pred_fallthru
          _
        // Predicated region
        $region57: #{tpu_custom_call.1} parent=11 // pred_check
          %p436 = pneg %p306
        $region58: #{tpu_custom_call.1} parent=11 // pred_check_branch
          %438 = sbr.rel (%p436) target = $region60
        $region59: #{tpu_custom_call.1} parent=11 // pred_region
          _
        $region60: #{tpu_custom_call.1} parent=11 // pred_fallthru
          _
      $region12: #{tpu_custom_call.1} parent=5 // pred_fallthru
        _
      %p439 = scmp.lt.s32.totalorder %s28, 2
      // Predicated region
      $region61: #{tpu_custom_call.1} parent=5 // pred_check
        %p440 = pneg %p439
      $region62: #{tpu_custom_call.1} parent=5 // pred_check_branch
        %442 = sbr.rel (%p440) target = $region64
      $region63: #{tpu_custom_call.1} parent=5 // pred_region
        // Predicated region
        $region65: #{tpu_custom_call.1} parent=63 // pred_check
          %p443 = pneg %p48
        $region66: #{tpu_custom_call.1} parent=63 // pred_check_branch
          %445 = sbr.rel (%p443) target = $region68
        $region67: #{tpu_custom_call.1} parent=63 // pred_region
          %s446 = sand.u32 %s38, 1
          %s447 = scalar_lea.sflag [#allocation3], %s446
          %s448 = sand.u32 %s38, 1
          %s449 = smul.addr %s448, 8
          %s450 = scalar_lea.vmem [#allocation2], %s449
          %s452 = ssub.s32 128, 128
          %453 = vsyncadd %s447, %s452
          %s454 = smul.addr %s28, 128
          %s455 = scalar_lea.hbm %s0, %s454
          %s457 = sshll.u32 %s450, 4
          %s458 = int_to_ptr.vmem [resolvable:$true] %s457
          %460 = dma.hbm_to_vmem [thread:$0]  %s455, 128, %s458, %s447
        $region68: #{tpu_custom_call.1} parent=63 // pred_fallthru
          _
      $region64: #{tpu_custom_call.1} parent=5 // pred_fallthru
        _
      %p461 = scmp.le.s32.totalorder 1, %s28
      %p462 = scmp.lt.s32.totalorder %s28, 3
      %p463 = pnand %p461, %p462
      %p464 = pneg %p463
      // Predicated region
      $region69: #{tpu_custom_call.1} parent=5 // pred_check
        _
      $region70: #{tpu_custom_call.1} parent=5 // pred_check_branch
        %466 = sbr.rel (%p463) target = $region72
      $region71: #{tpu_custom_call.1} parent=5 // pred_region
        %s467 = ssub.s32 %s28, 1
        %s468 = sand.u32 %s41, 1
        %s469 = scalar_lea.sflag [#allocation3], %s468
        %s470 = sand.u32 %s41, 1
        %s471 = smul.addr %s470, 8
        %s472 = scalar_lea.vmem [#allocation2], %s471
        // Predicated region
        $region73: #{tpu_custom_call.1} parent=71 // pred_check
          %p473 = pneg %p54
        $region74: #{tpu_custom_call.1} parent=71 // pred_check_branch
          %475 = sbr.rel (%p473) target = $region76
        $region75: #{tpu_custom_call.1} parent=71 // pred_region
          %476 = dma.done %s469, 128
        $region76: #{tpu_custom_call.1} parent=71 // pred_fallthru
          _
        // Predicated region
        $region77: #{tpu_custom_call.1} parent=71 // pred_check
          %p477 = pneg %p75
        $region78: #{tpu_custom_call.1} parent=71 // pred_check_branch
          %479 = sbr.rel (%p477) target = $region80
        $region79: #{tpu_custom_call.1} parent=71 // pred_region
          %480 = dma.done [#allocation6], 16
        $region80: #{tpu_custom_call.1} parent=71 // pred_fallthru
          _
        // Predicated region
        $region81: #{tpu_custom_call.1} parent=71 // pred_check
          %p481 = pneg %p96
        $region82: #{tpu_custom_call.1} parent=71 // pred_check_branch
          %483 = sbr.rel (%p481) target = $region84
        $region83: #{tpu_custom_call.1} parent=71 // pred_region
          %484 = dma.done [#allocation6], 16
        $region84: #{tpu_custom_call.1} parent=71 // pred_fallthru
          _
        // Predicated region
        $region85: #{tpu_custom_call.1} parent=71 // pred_check
          %p485 = pneg %p117
        $region86: #{tpu_custom_call.1} parent=71 // pred_check_branch
          %487 = sbr.rel (%p485) target = $region88
        $region87: #{tpu_custom_call.1} parent=71 // pred_region
          %488 = dma.done [#allocation9], 3072
        $region88: #{tpu_custom_call.1} parent=71 // pred_fallthru
          _
        // Predicated region
        $region89: #{tpu_custom_call.1} parent=71 // pred_check
          %p489 = pneg %p159
        $region90: #{tpu_custom_call.1} parent=71 // pred_check_branch
          %491 = sbr.rel (%p489) target = $region92
        $region91: #{tpu_custom_call.1} parent=71 // pred_region
          %492 = dma.done [#allocation9], 1024
        $region92: #{tpu_custom_call.1} parent=71 // pred_fallthru
          _
        // Predicated region
        $region93: #{tpu_custom_call.1} parent=71 // pred_check
          %p493 = pneg %p243
        $region94: #{tpu_custom_call.1} parent=71 // pred_check_branch
          %495 = sbr.rel (%p493) target = $region96
        $region95: #{tpu_custom_call.1} parent=71 // pred_region
          %496 = dma.done [#allocation12], 4096
        $region96: #{tpu_custom_call.1} parent=71 // pred_fallthru
          _
        // Predicated region
        $region97: #{tpu_custom_call.1} parent=71 // pred_check
          %p497 = pneg %p285
        $region98: #{tpu_custom_call.1} parent=71 // pred_check_branch
          %499 = sbr.rel (%p497) target = $region100
        $region99: #{tpu_custom_call.1} parent=71 // pred_region
          %500 = dma.done [#allocation12], 4096
        $region100: #{tpu_custom_call.1} parent=71 // pred_fallthru
          _
        %s501 = sand.u32 %s41, 1
        %s502 = scalar_lea.sflag [#allocation3], %s501
        %s503 = sand.u32 %s41, 1
        %s504 = smul.addr %s503, 8
        %s505 = scalar_lea.vmem [#allocation2], %s504
        %p506 = pneg %p54
        %p507 = pneg %p51
        %p508 = pneg %p75
        %p509 = pneg %p72
        %p510 = pneg %p96
        %p511 = pneg %p93
        %p512 = pneg %p117
        %p513 = pneg %p114
        %p514 = pneg %p138
        %p515 = pneg %p135
        %p516 = pneg %p159
        %p517 = pneg %p156
        %p518 = pneg %p180
        %p519 = pneg %p177
        %p520 = pneg %p201
        %p521 = pneg %p198
        %p522 = pneg %p222
        %p523 = pneg %p219
        %p524 = pneg %p243
        %p525 = pneg %p240
        %p526 = pneg %p264
        %p527 = pneg %p261
        %p528 = pneg %p285
        %p529 = pneg %p282
        %p530 = pneg %p306
        %p531 = pneg %p303
        %p532 = pneg %p332
        %p533 = pneg %p329
        %s534 = sand.u32 %s319, 1
        %s535 = scalar_lea.sflag [#allocation4], %s534
        %s536 = sand.u32 %s319, 1
        %s537 = smul.addr %s536, 8
        %s538 = scalar_lea.vmem [#allocation14], %s537
        %v540 = vld [vmem:[%s472] sm:$0xff]
        %v541 = vld [vmem:[#allocation5] sm:$0x1]
        %v542 = vld [vmem:[#allocation7] sm:$0x1]
        %543 = vadd.xlane.f32.xlu0 %v540
        %v544 = vpop.xlane.xlu0 %543
        %v545 = vrcp.pop 128.0
        %v546 = vmul.f32 %v544, %v545
        %v547 = vsub.f32 %v540, %v546
        %v548 = vmul.f32 %v547, %v547
        %549 = vadd.xlane.f32.xlu0 %v548
        %v550 = vpop.xlane.xlu0 %549
        %v551 = vmul.f32 %v550, %v545
        %v552 = vadd.f32 %v551, 1e-05
        %v553 = vrsqrt.pop %v552
        %v554 = vmul.f32 %v547, %v553
        %v556 = vlaneseq
        %v557 = vshrl.u32 %v556, 7
        %v558 = vsub.s32 0, %v557
        %v559 = vrot.slane %v541, %v558
        %v561 = vmul.f32 %v554, %v559
        %v563 = vlaneseq
        %v564 = vshrl.u32 %v563, 7
        %v565 = vsub.s32 0, %v564
        %v566 = vrot.slane %v542, %v565
        %v568 = vadd.f32 %v561, %v566
        %v569 = vpack.c.bf16 %v568, %v568
        %v570 = vld [vmem:[#allocation8] sm:$0xff]
        %v571 = vld [vmem:[#allocation8 + $0x8] sm:$0xf]
        %v572 = vld [vmem:[#allocation8 + $0xc] sm:$0xff]
        %v573 = vld [vmem:[#allocation8 + $0x14] sm:$0xf]
        %v574 = vld [vmem:[#allocation8 + $0x18] sm:$0xff]
        %v575 = vld [vmem:[#allocation8 + $0x20] sm:$0xf]
        %v576 = vld [vmem:[#allocation8 + $0x24] sm:$0xff]
        %v577 = vld [vmem:[#allocation8 + $0x2c] sm:$0xf]
        %v578 = vld [vmem:[#allocation8 + $0x30] sm:$0xff]
        %v579 = vld [vmem:[#allocation8 + $0x38] sm:$0xf]
        %v580 = vld [vmem:[#allocation8 + $0x3c] sm:$0xff]
        %v581 = vld [vmem:[#allocation8 + $0x44] sm:$0xf]
        %v582 = vld [vmem:[#allocation8 + $0x48] sm:$0xff]
        %v583 = vld [vmem:[#allocation8 + $0x50] sm:$0xf]
        %v584 = vld [vmem:[#allocation8 + $0x54] sm:$0xff]
        %v585 = vld [vmem:[#allocation8 + $0x5c] sm:$0xf]
        %v586 = vld [vmem:[#allocation8 + $0x60] sm:$0xff]
        %v587 = vld [vmem:[#allocation8 + $0x68] sm:$0xf]
        %v588 = vld [vmem:[#allocation8 + $0x6c] sm:$0xff]
        %v589 = vld [vmem:[#allocation8 + $0x74] sm:$0xf]
        %v590 = vld [vmem:[#allocation8 + $0x78] sm:$0xff]
        %v591 = vld [vmem:[#allocation8 + $0x80] sm:$0xf]
        %v592 = vld [vmem:[#allocation8 + $0x84] sm:$0xff]
        %v593 = vld [vmem:[#allocation8 + $0x8c] sm:$0xf]
        %v594 = vld [vmem:[#allocation8 + $0x90] sm:$0xff]
        %v595 = vld [vmem:[#allocation8 + $0x98] sm:$0xf]
        %v596 = vld [vmem:[#allocation8 + $0x9c] sm:$0xff]
        %v597 = vld [vmem:[#allocation8 + $0xa4] sm:$0xf]
        %v598 = vld [vmem:[#allocation8 + $0xa8] sm:$0xff]
        %v599 = vld [vmem:[#allocation8 + $0xb0] sm:$0xf]
        %v600 = vld [vmem:[#allocation8 + $0xb4] sm:$0xff]
        %v601 = vld [vmem:[#allocation8 + $0xbc] sm:$0xf]
        %v602 = vld [vmem:[%s4] sm:$0x7]
        %v604 = vlaneseq
        %v605 = vshrl.u32 %v604, 7
        %v606 = vsub.s32 0, %v605
        %v607 = vrot.slane %v602, %v606
        %v608 = vlaneseq
        %v609 = vshrl.u32 %v608, 7
        %v610 = vsub.s32 1, %v609
        %v611 = vrot.slane %v602, %v610
        %v612 = vlaneseq
        %v613 = vshrl.u32 %v612, 7
        %v614 = vsub.s32 2, %v613
        %v615 = vrot.slane %v602, %v614
        %v651 = vunpack.c.l.b16 %v570
        %v652 = vunpack.c.h.b16 %v570
        %v653 = vunpack.c.l.b16 %v571
        %v654 = vunpack.c.l.b16 %v572
        %v655 = vunpack.c.h.b16 %v572
        %v656 = vunpack.c.l.b16 %v573
        %v657 = vunpack.c.l.b16 %v574
        %v658 = vunpack.c.h.b16 %v574
        %v659 = vunpack.c.l.b16 %v575
        %v660 = vunpack.c.l.b16 %v576
        %v661 = vunpack.c.h.b16 %v576
        %v662 = vunpack.c.l.b16 %v577
        %v663 = vunpack.c.l.b16 %v578
        %v664 = vunpack.c.h.b16 %v578
        %v665 = vunpack.c.l.b16 %v579
        %v666 = vunpack.c.l.b16 %v580
        %v667 = vunpack.c.h.b16 %v580
        %v668 = vunpack.c.l.b16 %v581
        %v669 = vunpack.c.l.b16 %v582
        %v670 = vunpack.c.h.b16 %v582
        %v671 = vunpack.c.l.b16 %v583
        %v672 = vunpack.c.l.b16 %v584
        %v673 = vunpack.c.h.b16 %v584
        %v674 = vunpack.c.l.b16 %v585
        %v675 = vunpack.c.l.b16 %v586
        %v676 = vunpack.c.h.b16 %v586
        %v677 = vunpack.c.l.b16 %v587
        %v678 = vunpack.c.l.b16 %v588
        %v679 = vunpack.c.h.b16 %v588
        %v680 = vunpack.c.l.b16 %v589
        %v681 = vunpack.c.l.b16 %v590
        %v682 = vunpack.c.h.b16 %v590
        %v683 = vunpack.c.l.b16 %v591
        %v684 = vunpack.c.l.b16 %v592
        %v685 = vunpack.c.h.b16 %v592
        %v686 = vunpack.c.l.b16 %v593
        %v687 = vunpack.c.l.b16 %v594
        %v688 = vunpack.c.h.b16 %v594
        %v689 = vunpack.c.l.b16 %v595
        %v690 = vunpack.c.l.b16 %v596
        %v691 = vunpack.c.h.b16 %v596
        %v692 = vunpack.c.l.b16 %v597
        %v693 = vunpack.c.l.b16 %v598
        %v694 = vunpack.c.h.b16 %v598
        %v695 = vunpack.c.l.b16 %v599
        %v696 = vunpack.c.l.b16 %v600
        %v697 = vunpack.c.h.b16 %v600
        %v698 = vunpack.c.l.b16 %v601
        %v699 = vpack.c.b16 %v654, %v651
        %v700 = vpack.c.b16 %v655, %v652
        %v701 = vpack.c.b16 %v656, %v653
        %v702 = vpack.c.b16 %v660, %v657
        %v703 = vpack.c.b16 %v661, %v658
        %v704 = vpack.c.b16 %v662, %v659
        %v705 = vpack.c.b16 %v666, %v663
        %v706 = vpack.c.b16 %v667, %v664
        %v707 = vpack.c.b16 %v668, %v665
        %v708 = vpack.c.b16 %v672, %v669
        %v709 = vpack.c.b16 %v673, %v670
        %v710 = vpack.c.b16 %v674, %v671
        %v711 = vpack.c.b16 %v678, %v675
        %v712 = vpack.c.b16 %v679, %v676
        %v713 = vpack.c.b16 %v680, %v677
        %v714 = vpack.c.b16 %v684, %v681
        %v715 = vpack.c.b16 %v685, %v682
        %v716 = vpack.c.b16 %v686, %v683
        %v717 = vpack.c.b16 %v690, %v687
        %v718 = vpack.c.b16 %v691, %v688
        %v719 = vpack.c.b16 %v692, %v689
        %v720 = vpack.c.b16 %v696, %v693
        %v721 = vpack.c.b16 %v697, %v694
        %v722 = vpack.c.b16 %v698, %v695
        %747 = vmatprep.subr.bf16.mxu0 %v721
        %748 = vmatpush1.bf16.msra.mxu0 %v720
        %749 = vmatprep.subr.bf16.mxu0 %v718
        %750 = vmatpush1.bf16.msra.mxu0 %v717
        %751 = vmatprep.subr.bf16.mxu0 %v715
        %752 = vmatpush1.bf16.msra.mxu0 %v714
        %753 = vmatprep.subr.bf16.mxu0 %v712
        %754 = vmatpush1.bf16.msra.mxu0 %v711
        %755 = vmatprep.subr.bf16.mxu0 %v709
        %756 = vmatpush1.bf16.msra.mxu0 %v708
        %757 = vmatprep.subr.bf16.mxu0 %v706
        %758 = vmatpush1.bf16.msra.mxu0 %v705
        %759 = vmatprep.subr.bf16.mxu0 %v703
        %760 = vmatpush1.bf16.msra.mxu0 %v702
        %761 = vmatprep.subr.bf16.mxu0 %v700
        %762 = vmatpush1.bf16.msra.mxu0 %v699
        %763 = vmatprep.subr.bf16.mxu0 0
        %764 = vmatpush2.bf16.msra.mxu0 0
        %765 = vmatprep.subr.bf16.mxu0 0
        %766 = vmatpush2.bf16.msra.mxu0 0
        %767 = vmatprep.subr.bf16.mxu0 0
        %768 = vmatpush2.bf16.msra.mxu0 0
        %769 = vmatprep.subr.bf16.mxu0 0
        %770 = vmatpush2.bf16.msra.mxu0 0
        %771 = vmatprep.subr.bf16.mxu0 0
        %772 = vmatpush2.bf16.msra.mxu0 0
        %773 = vmatprep.subr.bf16.mxu0 0
        %774 = vmatpush2.bf16.msra.mxu0 0
        %775 = vmatprep.subr.bf16.mxu0 0
        %776 = vmatpush2.bf16.msra.mxu0 0
        %777 = vmatprep.subr.bf16.mxu0 0
        %778 = vmatpush2.bf16.msra.mxu0 0
        %779 = vmatprep.mubr.bf16.mxu0 0
        %780 = vmatmul.mubr.bf16.gmra.mxu0 %v569
        %v781 = vpop.f32.mrf.mxu0
        %v782 = vadd.f32 %v607, %v781
        %v783 = vpop.f32.mrf.mxu0
        %v784 = vadd.f32 %v611, %v783
        %v785 = vpop.f32.mrf.mxu0
        %v786 = vpop.f32.mrf.mxu0
        %787 = vdwg.mxu0
        %788 = vmatprep.subr.bf16.mxu0 0
        %789 = vmatpush1.bf16.msra.mxu0 %v722
        %790 = vmatprep.subr.bf16.mxu0 0
        %791 = vmatpush1.bf16.msra.mxu0 %v719
        %792 = vmatprep.subr.bf16.mxu0 0
        %793 = vmatpush1.bf16.msra.mxu0 %v716
        %794 = vmatprep.subr.bf16.mxu0 0
        %795 = vmatpush1.bf16.msra.mxu0 %v713
        %796 = vmatprep.subr.bf16.mxu0 0
        %797 = vmatpush1.bf16.msra.mxu0 %v710
        %798 = vmatprep.subr.bf16.mxu0 0
        %799 = vmatpush1.bf16.msra.mxu0 %v707
        %800 = vmatprep.subr.bf16.mxu0 0
        %801 = vmatpush1.bf16.msra.mxu0 %v704
        %802 = vmatprep.subr.bf16.mxu0 0
        %803 = vmatpush1.bf16.msra.mxu0 %v701
        %804 = vmatprep.subr.bf16.mxu0 0
        %805 = vmatpush2.bf16.msra.mxu0 0
        %806 = vmatprep.subr.bf16.mxu0 0
        %807 = vmatpush2.bf16.msra.mxu0 0
        %808 = vmatprep.subr.bf16.mxu0 0
        %809 = vmatpush2.bf16.msra.mxu0 0
        %810 = vmatprep.subr.bf16.mxu0 0
        %811 = vmatpush2.bf16.msra.mxu0 0
        %812 = vmatprep.subr.bf16.mxu0 0
        %813 = vmatpush2.bf16.msra.mxu0 0
        %814 = vmatprep.subr.bf16.mxu0 0
        %815 = vmatpush2.bf16.msra.mxu0 0
        %816 = vmatprep.subr.bf16.mxu0 0
        %817 = vmatpush2.bf16.msra.mxu0 0
        %818 = vmatprep.subr.bf16.mxu0 0
        %819 = vmatpush2.bf16.msra.mxu0 0
        %820 = vmatprep.mubr.bf16.mxu0 0
        %821 = vmatmul.mubr.bf16.gmra.mxu0 %v569
        %v822 = vpop.f32.mrf.mxu0
        %v823 = vadd.f32 %v615, %v822
        %v824 = vpop.f32.mrf.mxu0
        %v825 = vpop.f32.mrf.mxu0
        %v826 = vpop.f32.mrf.mxu0
        %827 = vdwg.mxu0
        %v828 = vpack.c.bf16 %v782, %v782
        %v829 = vpack.c.bf16 %v784, %v784
        %v830 = vpack.c.bf16 %v823, %v823
        %vm831 = vcmask 261120
        %v833 = vsel %vm831, %v828, 0
        %v836 = vsel %vm831, %v829, 0
        %838 = vmatprep.subr.bf16.mxu0 0
        %839 = vmatpush1.bf16.xpose.msra.mxu0 0
        %840 = vmatprep.subr.bf16.mxu0 0
        %841 = vmatpush1.bf16.xpose.msra.mxu0 0
        %842 = vmatprep.subr.bf16.mxu0 0
        %843 = vmatpush1.bf16.xpose.msra.mxu0 0
        %844 = vmatprep.subr.bf16.mxu0 0
        %845 = vmatpush1.bf16.xpose.msra.mxu0 0
        %846 = vmatprep.subr.bf16.mxu0 0
        %847 = vmatpush1.bf16.xpose.msra.mxu0 0
        %848 = vmatprep.subr.bf16.mxu0 0
        %849 = vmatpush1.bf16.xpose.msra.mxu0 0
        %850 = vmatprep.subr.bf16.mxu0 0
        %851 = vmatpush1.bf16.xpose.msra.mxu0 0
        %852 = vmatprep.subr.bf16.mxu0 0
        %853 = vmatpush1.bf16.xpose.msra.mxu0 %v836
        %854 = vmatprep.subr.bf16.mxu0 0
        %855 = vmatpush2.bf16.xpose.msra.mxu0 0
        %856 = vmatprep.subr.bf16.mxu0 0
        %857 = vmatpush2.bf16.xpose.msra.mxu0 0
        %858 = vmatprep.subr.bf16.mxu0 0
        %859 = vmatpush2.bf16.xpose.msra.mxu0 0
        %860 = vmatprep.subr.bf16.mxu0 0
        %861 = vmatpush2.bf16.xpose.msra.mxu0 0
        %862 = vmatprep.subr.bf16.mxu0 0
        %863 = vmatpush2.bf16.xpose.msra.mxu0 0
        %864 = vmatprep.subr.bf16.mxu0 0
        %865 = vmatpush2.bf16.xpose.msra.mxu0 0
        %866 = vmatprep.subr.bf16.mxu0 0
        %867 = vmatpush2.bf16.xpose.msra.mxu0 0
        %868 = vmatprep.subr.bf16.mxu0 0
        %869 = vmatpush2.bf16.xpose.msra.mxu0 0
        %870 = vmatprep.mubr.bf16.mxu0 0
        %871 = vmatmul.mubr.bf16.gmra.mxu0 %v833
        %v872 = vpop.f32.mrf.mxu0
        %v873 = vadd.f32 0.0, %v872
        %v874 = vpop.f32.mrf.mxu0
        %v875 = vpop.f32.mrf.mxu0
        %v876 = vpop.f32.mrf.mxu0
        %877 = vdwg.mxu0
        %vm878 = vcmask 64512
        %v879 = vsel %vm878, %v873, -inf
        %880 = vmax.xlane.f32.xlu0 %v879
        %v881 = vpop.xlane.xlu0 %880
        %v882 = vsub.f32 %v873, %v881
        %v883 = vmul.f32 %v882, 1.442695
        %v884 = vpow.pop %v883
        %v885 = vsel %vm878, %v884, 0.0
        %886 = vadd.xlane.f32.xlu0 %v885
        %v887 = vpop.xlane.xlu0 %886
        %v888 = vrcp.pop %v887
        %v889 = vmul.f32 %v884, %v888
        %v890 = vpack.c.bf16 %v889, %v889
        %v892 = vsel %vm878, %v890, 0
        %vm894 = vcmask 1043456
        %v896 = vsel %vm894, %v830, 0
        %898 = vmatprep.subr.bf16.mxu0 0
        %899 = vmatpush1.bf16.msra.mxu0 0
        %900 = vmatprep.subr.bf16.mxu0 0
        %901 = vmatpush1.bf16.msra.mxu0 0
        %902 = vmatprep.subr.bf16.mxu0 0
        %903 = vmatpush1.bf16.msra.mxu0 0
        %904 = vmatprep.subr.bf16.mxu0 0
        %905 = vmatpush1.bf16.msra.mxu0 0
        %906 = vmatprep.subr.bf16.mxu0 0
        %907 = vmatpush1.bf16.msra.mxu0 0
        %908 = vmatprep.subr.bf16.mxu0 0
        %909 = vmatpush1.bf16.msra.mxu0 0
        %910 = vmatprep.subr.bf16.mxu0 0
        %911 = vmatpush1.bf16.msra.mxu0 0
        %912 = vmatprep.subr.bf16.mxu0 0
        %913 = vmatpush1.bf16.msra.mxu0 %v896
        %914 = vmatprep.subr.bf16.mxu0 0
        %915 = vmatpush2.bf16.msra.mxu0 0
        %916 = vmatprep.subr.bf16.mxu0 0
        %917 = vmatpush2.bf16.msra.mxu0 0
        %918 = vmatprep.subr.bf16.mxu0 0
        %919 = vmatpush2.bf16.msra.mxu0 0
        %920 = vmatprep.subr.bf16.mxu0 0
        %921 = vmatpush2.bf16.msra.mxu0 0
        %922 = vmatprep.subr.bf16.mxu0 0
        %923 = vmatpush2.bf16.msra.mxu0 0
        %924 = vmatprep.subr.bf16.mxu0 0
        %925 = vmatpush2.bf16.msra.mxu0 0
        %926 = vmatprep.subr.bf16.mxu0 0
        %927 = vmatpush2.bf16.msra.mxu0 0
        %928 = vmatprep.subr.bf16.mxu0 0
        %929 = vmatpush2.bf16.msra.mxu0 0
        %930 = vmatprep.mubr.bf16.mxu0 0
        %931 = vmatmul.mubr.bf16.gmra.mxu0 %v892
        %v932 = vpop.f32.mrf.mxu0
        %v933 = vadd.f32 0.0, %v932
        %v934 = vpop.f32.mrf.mxu0
        %v935 = vpop.f32.mrf.mxu0
        %v936 = vpop.f32.mrf.mxu0
        %937 = vdwg.mxu0
        %939 = vrot.lane.b32.xlu0 %v828, 96
        %v940 = vpop.permute.xlu0 %939
        %942 = vrot.lane.b32.xlu0 %v829, 96
        %v943 = vpop.permute.xlu0 %942
        %v945 = vsel %vm831, %v940, 0
        %v948 = vsel %vm831, %v943, 0
        %950 = vmatprep.subr.bf16.mxu0 0
        %951 = vmatpush1.bf16.xpose.msra.mxu0 0
        %952 = vmatprep.subr.bf16.mxu0 0
        %953 = vmatpush1.bf16.xpose.msra.mxu0 0
        %954 = vmatprep.subr.bf16.mxu0 0
        %955 = vmatpush1.bf16.xpose.msra.mxu0 0
        %956 = vmatprep.subr.bf16.mxu0 0
        %957 = vmatpush1.bf16.xpose.msra.mxu0 0
        %958 = vmatprep.subr.bf16.mxu0 0
        %959 = vmatpush1.bf16.xpose.msra.mxu0 0
        %960 = vmatprep.subr.bf16.mxu0 0
        %961 = vmatpush1.bf16.xpose.msra.mxu0 0
        %962 = vmatprep.subr.bf16.mxu0 0
        %963 = vmatpush1.bf16.xpose.msra.mxu0 0
        %964 = vmatprep.subr.bf16.mxu0 0
        %965 = vmatpush1.bf16.xpose.msra.mxu0 %v948
        %966 = vmatprep.subr.bf16.mxu0 0
        %967 = vmatpush2.bf16.xpose.msra.mxu0 0
        %968 = vmatprep.subr.bf16.mxu0 0
        %969 = vmatpush2.bf16.xpose.msra.mxu0 0
        %970 = vmatprep.subr.bf16.mxu0 0
        %971 = vmatpush2.bf16.xpose.msra.mxu0 0
        %972 = vmatprep.subr.bf16.mxu0 0
        %973 = vmatpush2.bf16.xpose.msra.mxu0 0
        %974 = vmatprep.subr.bf16.mxu0 0
        %975 = vmatpush2.bf16.xpose.msra.mxu0 0
        %976 = vmatprep.subr.bf16.mxu0 0
        %977 = vmatpush2.bf16.xpose.msra.mxu0 0
        %978 = vmatprep.subr.bf16.mxu0 0
        %979 = vmatpush2.bf16.xpose.msra.mxu0 0
        %980 = vmatprep.subr.bf16.mxu0 0
        %981 = vmatpush2.bf16.xpose.msra.mxu0 0
        %982 = vmatprep.mubr.bf16.mxu0 0
        %983 = vmatmul.mubr.bf16.gmra.mxu0 %v945
        %v984 = vpop.f32.mrf.mxu0
        %v985 = vadd.f32 0.0, %v984
        %v986 = vpop.f32.mrf.mxu0
        %v987 = vpop.f32.mrf.mxu0
        %v988 = vpop.f32.mrf.mxu0
        %989 = vdwg.mxu0
        %v990 = vsel %vm878, %v985, -inf
        %991 = vmax.xlane.f32.xlu0 %v990
        %v992 = vpop.xlane.xlu0 %991
        %v993 = vsub.f32 %v985, %v992
        %v994 = vmul.f32 %v993, 1.442695
        %v995 = vpow.pop %v994
        %v996 = vsel %vm878, %v995, 0.0
        %997 = vadd.xlane.f32.xlu0 %v996
        %v998 = vpop.xlane.xlu0 %997
        %v999 = vrcp.pop %v998
        %v1000 = vmul.f32 %v995, %v999
        %v1001 = vpack.c.bf16 %v1000, %v1000
        %1003 = vrot.lane.b32.xlu0 %v830, 96
        %v1004 = vpop.permute.xlu0 %1003
        %v1006 = vsel %vm878, %v1001, 0
        %v1009 = vsel %vm894, %v1004, 0
        %1011 = vmatprep.subr.bf16.mxu0 0
        %1012 = vmatpush1.bf16.msra.mxu0 0
        %1013 = vmatprep.subr.bf16.mxu0 0
        %1014 = vmatpush1.bf16.msra.mxu0 0
        %1015 = vmatprep.subr.bf16.mxu0 0
        %1016 = vmatpush1.bf16.msra.mxu0 0
        %1017 = vmatprep.subr.bf16.mxu0 0
        %1018 = vmatpush1.bf16.msra.mxu0 0
        %1019 = vmatprep.subr.bf16.mxu0 0
        %1020 = vmatpush1.bf16.msra.mxu0 0
        %1021 = vmatprep.subr.bf16.mxu0 0
        %1022 = vmatpush1.bf16.msra.mxu0 0
        %1023 = vmatprep.subr.bf16.mxu0 0
        %1024 = vmatpush1.bf16.msra.mxu0 0
        %1025 = vmatprep.subr.bf16.mxu0 0
        %1026 = vmatpush1.bf16.msra.mxu0 %v1009
        %1027 = vmatprep.subr.bf16.mxu0 0
        %1028 = vmatpush2.bf16.msra.mxu0 0
        %1029 = vmatprep.subr.bf16.mxu0 0
        %1030 = vmatpush2.bf16.msra.mxu0 0
        %1031 = vmatprep.subr.bf16.mxu0 0
        %1032 = vmatpush2.bf16.msra.mxu0 0
        %1033 = vmatprep.subr.bf16.mxu0 0
        %1034 = vmatpush2.bf16.msra.mxu0 0
        %1035 = vmatprep.subr.bf16.mxu0 0
        %1036 = vmatpush2.bf16.msra.mxu0 0
        %1037 = vmatprep.subr.bf16.mxu0 0
        %1038 = vmatpush2.bf16.msra.mxu0 0
        %1039 = vmatprep.subr.bf16.mxu0 0
        %1040 = vmatpush2.bf16.msra.mxu0 0
        %1041 = vmatprep.subr.bf16.mxu0 0
        %1042 = vmatpush2.bf16.msra.mxu0 0
        %1043 = vmatprep.mubr.bf16.mxu0 0
        %1044 = vmatmul.mubr.bf16.gmra.mxu0 %v1006
        %v1045 = vpop.f32.mrf.mxu0
        %v1046 = vadd.f32 0.0, %v1045
        %v1047 = vpop.f32.mrf.mxu0
        %v1048 = vpop.f32.mrf.mxu0
        %v1049 = vpop.f32.mrf.mxu0
        %1050 = vdwg.mxu0
        %1051 = vrot.lane.b32.xlu0 %v828, 64
        %v1052 = vpop.permute.xlu0 %1051
        %1053 = vrot.lane.b32.xlu0 %v829, 64
        %v1054 = vpop.permute.xlu0 %1053
        %v1056 = vsel %vm831, %v1052, 0
        %v1059 = vsel %vm831, %v1054, 0
        %1061 = vmatprep.subr.bf16.mxu0 0
        %1062 = vmatpush1.bf16.xpose.msra.mxu0 0
        %1063 = vmatprep.subr.bf16.mxu0 0
        %1064 = vmatpush1.bf16.xpose.msra.mxu0 0
        %1065 = vmatprep.subr.bf16.mxu0 0
        %1066 = vmatpush1.bf16.xpose.msra.mxu0 0
        %1067 = vmatprep.subr.bf16.mxu0 0
        %1068 = vmatpush1.bf16.xpose.msra.mxu0 0
        %1069 = vmatprep.subr.bf16.mxu0 0
        %1070 = vmatpush1.bf16.xpose.msra.mxu0 0
        %1071 = vmatprep.subr.bf16.mxu0 0
        %1072 = vmatpush1.bf16.xpose.msra.mxu0 0
        %1073 = vmatprep.subr.bf16.mxu0 0
        %1074 = vmatpush1.bf16.xpose.msra.mxu0 0
        %1075 = vmatprep.subr.bf16.mxu0 0
        %1076 = vmatpush1.bf16.xpose.msra.mxu0 %v1059
        %1077 = vmatprep.subr.bf16.mxu0 0
        %1078 = vmatpush2.bf16.xpose.msra.mxu0 0
        %1079 = vmatprep.subr.bf16.mxu0 0
        %1080 = vmatpush2.bf16.xpose.msra.mxu0 0
        %1081 = vmatprep.subr.bf16.mxu0 0
        %1082 = vmatpush2.bf16.xpose.msra.mxu0 0
        %1083 = vmatprep.subr.bf16.mxu0 0
        %1084 = vmatpush2.bf16.xpose.msra.mxu0 0
        %1085 = vmatprep.subr.bf16.mxu0 0
        %1086 = vmatpush2.bf16.xpose.msra.mxu0 0
        %1087 = vmatprep.subr.bf16.mxu0 0
        %1088 = vmatpush2.bf16.xpose.msra.mxu0 0
        %1089 = vmatprep.subr.bf16.mxu0 0
        %1090 = vmatpush2.bf16.xpose.msra.mxu0 0
        %1091 = vmatprep.subr.bf16.mxu0 0
        %1092 = vmatpush2.bf16.xpose.msra.mxu0 0
        %1093 = vmatprep.mubr.bf16.mxu0 0
        %1094 = vmatmul.mubr.bf16.gmra.mxu0 %v1056
        %v1095 = vpop.f32.mrf.mxu0
        %v1096 = vadd.f32 0.0, %v1095
        %v1097 = vpop.f32.mrf.mxu0
        %v1098 = vpop.f32.mrf.mxu0
        %v1099 = vpop.f32.mrf.mxu0
        %1100 = vdwg.mxu0
        %v1101 = vsel %vm878, %v1096, -inf
        %1102 = vmax.xlane.f32.xlu0 %v1101
        %v1103 = vpop.xlane.xlu0 %1102
        %v1104 = vsub.f32 %v1096, %v1103
        %v1105 = vmul.f32 %v1104, 1.442695
        %v1106 = vpow.pop %v1105
        %v1107 = vsel %vm878, %v1106, 0.0
        %1108 = vadd.xlane.f32.xlu0 %v1107
        %v1109 = vpop.xlane.xlu0 %1108
        %v1110 = vrcp.pop %v1109
        %v1111 = vmul.f32 %v1106, %v1110
        %v1112 = vpack.c.bf16 %v1111, %v1111
        %1113 = vrot.lane.b32.xlu0 %v830, 64
        %v1114 = vpop.permute.xlu0 %1113
        %v1116 = vsel %vm878, %v1112, 0
        %v1119 = vsel %vm894, %v1114, 0
        %1121 = vmatprep.subr.bf16.mxu0 0
        %1122 = vmatpush1.bf16.msra.mxu0 0
        %1123 = vmatprep.subr.bf16.mxu0 0
        %1124 = vmatpush1.bf16.msra.mxu0 0
        %1125 = vmatprep.subr.bf16.mxu0 0
        %1126 = vmatpush1.bf16.msra.mxu0 0
        %1127 = vmatprep.subr.bf16.mxu0 0
        %1128 = vmatpush1.bf16.msra.mxu0 0
        %1129 = vmatprep.subr.bf16.mxu0 0
        %1130 = vmatpush1.bf16.msra.mxu0 0
        %1131 = vmatprep.subr.bf16.mxu0 0
        %1132 = vmatpush1.bf16.msra.mxu0 0
        %1133 = vmatprep.subr.bf16.mxu0 0
        %1134 = vmatpush1.bf16.msra.mxu0 0
        %1135 = vmatprep.subr.bf16.mxu0 0
        %1136 = vmatpush1.bf16.msra.mxu0 %v1119
        %1137 = vmatprep.subr.bf16.mxu0 0
        %1138 = vmatpush2.bf16.msra.mxu0 0
        %1139 = vmatprep.subr.bf16.mxu0 0
        %1140 = vmatpush2.bf16.msra.mxu0 0
        %1141 = vmatprep.subr.bf16.mxu0 0
        %1142 = vmatpush2.bf16.msra.mxu0 0
        %1143 = vmatprep.subr.bf16.mxu0 0
        %1144 = vmatpush2.bf16.msra.mxu0 0
        %1145 = vmatprep.subr.bf16.mxu0 0
        %1146 = vmatpush2.bf16.msra.mxu0 0
        %1147 = vmatprep.subr.bf16.mxu0 0
        %1148 = vmatpush2.bf16.msra.mxu0 0
        %1149 = vmatprep.subr.bf16.mxu0 0
        %1150 = vmatpush2.bf16.msra.mxu0 0
        %1151 = vmatprep.subr.bf16.mxu0 0
        %1152 = vmatpush2.bf16.msra.mxu0 0
        %1153 = vmatprep.mubr.bf16.mxu0 0
        %1154 = vmatmul.mubr.bf16.gmra.mxu0 %v1116
        %v1155 = vpop.f32.mrf.mxu0
        %v1156 = vadd.f32 0.0, %v1155
        %v1157 = vpop.f32.mrf.mxu0
        %v1158 = vpop.f32.mrf.mxu0
        %v1159 = vpop.f32.mrf.mxu0
        %1160 = vdwg.mxu0
        %1161 = vrot.lane.b32.xlu0 %v828, 32
        %v1162 = vpop.permute.xlu0 %1161
        %1163 = vrot.lane.b32.xlu0 %v829, 32
        %v1164 = vpop.permute.xlu0 %1163
        %v1166 = vsel %vm831, %v1162, 0
        %v1169 = vsel %vm831, %v1164, 0
        %1171 = vmatprep.subr.bf16.mxu0 0
        %1172 = vmatpush1.bf16.xpose.msra.mxu0 0
        %1173 = vmatprep.subr.bf16.mxu0 0
        %1174 = vmatpush1.bf16.xpose.msra.mxu0 0
        %1175 = vmatprep.subr.bf16.mxu0 0
        %1176 = vmatpush1.bf16.xpose.msra.mxu0 0
        %1177 = vmatprep.subr.bf16.mxu0 0
        %1178 = vmatpush1.bf16.xpose.msra.mxu0 0
        %1179 = vmatprep.subr.bf16.mxu0 0
        %1180 = vmatpush1.bf16.xpose.msra.mxu0 0
        %1181 = vmatprep.subr.bf16.mxu0 0
        %1182 = vmatpush1.bf16.xpose.msra.mxu0 0
        %1183 = vmatprep.subr.bf16.mxu0 0
        %1184 = vmatpush1.bf16.xpose.msra.mxu0 0
        %1185 = vmatprep.subr.bf16.mxu0 0
        %1186 = vmatpush1.bf16.xpose.msra.mxu0 %v1169
        %1187 = vmatprep.subr.bf16.mxu0 0
        %1188 = vmatpush2.bf16.xpose.msra.mxu0 0
        %1189 = vmatprep.subr.bf16.mxu0 0
        %1190 = vmatpush2.bf16.xpose.msra.mxu0 0
        %1191 = vmatprep.subr.bf16.mxu0 0
        %1192 = vmatpush2.bf16.xpose.msra.mxu0 0
        %1193 = vmatprep.subr.bf16.mxu0 0
        %1194 = vmatpush2.bf16.xpose.msra.mxu0 0
        %1195 = vmatprep.subr.bf16.mxu0 0
        %1196 = vmatpush2.bf16.xpose.msra.mxu0 0
        %1197 = vmatprep.subr.bf16.mxu0 0
        %1198 = vmatpush2.bf16.xpose.msra.mxu0 0
        %1199 = vmatprep.subr.bf16.mxu0 0
        %1200 = vmatpush2.bf16.xpose.msra.mxu0 0
        %1201 = vmatprep.subr.bf16.mxu0 0
        %1202 = vmatpush2.bf16.xpose.msra.mxu0 0
        %1203 = vmatprep.mubr.bf16.mxu0 0
        %1204 = vmatmul.mubr.bf16.gmra.mxu0 %v1166
        %v1205 = vpop.f32.mrf.mxu0
        %v1206 = vadd.f32 0.0, %v1205
        %v1207 = vpop.f32.mrf.mxu0
        %v1208 = vpop.f32.mrf.mxu0
        %v1209 = vpop.f32.mrf.mxu0
        %1210 = vdwg.mxu0
        %v1211 = vsel %vm878, %v1206, -inf
        %1212 = vmax.xlane.f32.xlu0 %v1211
        %v1213 = vpop.xlane.xlu0 %1212
        %v1214 = vsub.f32 %v1206, %v1213
        %v1215 = vmul.f32 %v1214, 1.442695
        %v1216 = vpow.pop %v1215
        %v1217 = vsel %vm878, %v1216, 0.0
        %1218 = vadd.xlane.f32.xlu0 %v1217
        %v1219 = vpop.xlane.xlu0 %1218
        %v1220 = vrcp.pop %v1219
        %v1221 = vmul.f32 %v1216, %v1220
        %v1222 = vpack.c.bf16 %v1221, %v1221
        %1223 = vrot.lane.b32.xlu0 %v830, 32
        %v1224 = vpop.permute.xlu0 %1223
        %v1226 = vsel %vm878, %v1222, 0
        %v1229 = vsel %vm894, %v1224, 0
        %1231 = vmatprep.subr.bf16.mxu0 0
        %1232 = vmatpush1.bf16.msra.mxu0 0
        %1233 = vmatprep.subr.bf16.mxu0 0
        %1234 = vmatpush1.bf16.msra.mxu0 0
        %1235 = vmatprep.subr.bf16.mxu0 0
        %1236 = vmatpush1.bf16.msra.mxu0 0
        %1237 = vmatprep.subr.bf16.mxu0 0
        %1238 = vmatpush1.bf16.msra.mxu0 0
        %1239 = vmatprep.subr.bf16.mxu0 0
        %1240 = vmatpush1.bf16.msra.mxu0 0
        %1241 = vmatprep.subr.bf16.mxu0 0
        %1242 = vmatpush1.bf16.msra.mxu0 0
        %1243 = vmatprep.subr.bf16.mxu0 0
        %1244 = vmatpush1.bf16.msra.mxu0 0
        %1245 = vmatprep.subr.bf16.mxu0 0
        %1246 = vmatpush1.bf16.msra.mxu0 %v1229
        %1247 = vmatprep.subr.bf16.mxu0 0
        %1248 = vmatpush2.bf16.msra.mxu0 0
        %1249 = vmatprep.subr.bf16.mxu0 0
        %1250 = vmatpush2.bf16.msra.mxu0 0
        %1251 = vmatprep.subr.bf16.mxu0 0
        %1252 = vmatpush2.bf16.msra.mxu0 0
        %1253 = vmatprep.subr.bf16.mxu0 0
        %1254 = vmatpush2.bf16.msra.mxu0 0
        %1255 = vmatprep.subr.bf16.mxu0 0
        %1256 = vmatpush2.bf16.msra.mxu0 0
        %1257 = vmatprep.subr.bf16.mxu0 0
        %1258 = vmatpush2.bf16.msra.mxu0 0
        %1259 = vmatprep.subr.bf16.mxu0 0
        %1260 = vmatpush2.bf16.msra.mxu0 0
        %1261 = vmatprep.subr.bf16.mxu0 0
        %1262 = vmatpush2.bf16.msra.mxu0 0
        %1263 = vmatprep.mubr.bf16.mxu0 0
        %1264 = vmatmul.mubr.bf16.gmra.mxu0 %v1226
        %v1265 = vpop.f32.mrf.mxu0
        %v1266 = vadd.f32 0.0, %v1265
        %v1267 = vpop.f32.mrf.mxu0
        %v1268 = vpop.f32.mrf.mxu0
        %v1269 = vpop.f32.mrf.mxu0
        %1270 = vdwg.mxu0
        %1272 = vrot.lane.b32.xlu0 %v1046, 32
        %v1273 = vpop.permute.xlu0 %1272
        %1276 = vrot.lane.b32.xlu0 %v1156, 64
        %v1277 = vpop.permute.xlu0 %1276
        %1280 = vrot.lane.b32.xlu0 %v1266, 96
        %v1281 = vpop.permute.xlu0 %1280
        %v1283 = vsel %vm831, %v933, %v1273
        %vm1284 = vcmask 523264
        %v1285 = vsel %vm1284, %v1283, %v1277
        %vm1286 = vcmask 785408
        %v1287 = vsel %vm1286, %v1285, %v1281
        %v1288 = vpack.c.bf16 %v1287, %v1287
        %v1289 = vld [vmem:[#allocation10] sm:$0xf]
        %v1290 = vld [vmem:[#allocation10 + $0x4] sm:$0xf]
        %v1291 = vld [vmem:[#allocation10 + $0x8] sm:$0xf]
        %v1292 = vld [vmem:[#allocation10 + $0xc] sm:$0xf]
        %v1293 = vld [vmem:[#allocation10 + $0x10] sm:$0xf]
        %v1294 = vld [vmem:[#allocation10 + $0x14] sm:$0xf]
        %v1295 = vld [vmem:[#allocation10 + $0x18] sm:$0xf]
        %v1296 = vld [vmem:[#allocation10 + $0x1c] sm:$0xf]
        %v1297 = vld [vmem:[#allocation10 + $0x20] sm:$0xf]
        %v1298 = vld [vmem:[#allocation10 + $0x24] sm:$0xf]
        %v1299 = vld [vmem:[#allocation10 + $0x28] sm:$0xf]
        %v1300 = vld [vmem:[#allocation10 + $0x2c] sm:$0xf]
        %v1301 = vld [vmem:[#allocation10 + $0x30] sm:$0xf]
        %v1302 = vld [vmem:[#allocation10 + $0x34] sm:$0xf]
        %v1303 = vld [vmem:[#allocation10 + $0x38] sm:$0xf]
        %v1304 = vld [vmem:[#allocation10 + $0x3c] sm:$0xf]
        %v1305 = vld [vmem:[%s6] sm:$0x1]
        %v1307 = vlaneseq
        %v1308 = vshrl.u32 %v1307, 7
        %v1309 = vsub.s32 0, %v1308
        %v1310 = vrot.slane %v1305, %v1309
        %v1328 = vunpack.c.l.b16 %v1289
        %v1329 = vunpack.c.l.b16 %v1290
        %v1330 = vunpack.c.l.b16 %v1291
        %v1331 = vunpack.c.l.b16 %v1292
        %v1332 = vunpack.c.l.b16 %v1293
        %v1333 = vunpack.c.l.b16 %v1294
        %v1334 = vunpack.c.l.b16 %v1295
        %v1335 = vunpack.c.l.b16 %v1296
        %v1336 = vunpack.c.l.b16 %v1297
        %v1337 = vunpack.c.l.b16 %v1298
        %v1338 = vunpack.c.l.b16 %v1299
        %v1339 = vunpack.c.l.b16 %v1300
        %v1340 = vunpack.c.l.b16 %v1301
        %v1341 = vunpack.c.l.b16 %v1302
        %v1342 = vunpack.c.l.b16 %v1303
        %v1343 = vunpack.c.l.b16 %v1304
        %v1344 = vpack.c.b16 %v1329, %v1328
        %v1345 = vpack.c.b16 %v1331, %v1330
        %v1346 = vpack.c.b16 %v1333, %v1332
        %v1347 = vpack.c.b16 %v1335, %v1334
        %v1348 = vpack.c.b16 %v1337, %v1336
        %v1349 = vpack.c.b16 %v1339, %v1338
        %v1350 = vpack.c.b16 %v1341, %v1340
        %v1351 = vpack.c.b16 %v1343, %v1342
        %1360 = vmatprep.subr.bf16.mxu0 0
        %1361 = vmatpush1.bf16.msra.mxu0 %v1351
        %1362 = vmatprep.subr.bf16.mxu0 0
        %1363 = vmatpush1.bf16.msra.mxu0 %v1350
        %1364 = vmatprep.subr.bf16.mxu0 0
        %1365 = vmatpush1.bf16.msra.mxu0 %v1349
        %1366 = vmatprep.subr.bf16.mxu0 0
        %1367 = vmatpush1.bf16.msra.mxu0 %v1348
        %1368 = vmatprep.subr.bf16.mxu0 0
        %1369 = vmatpush1.bf16.msra.mxu0 %v1347
        %1370 = vmatprep.subr.bf16.mxu0 0
        %1371 = vmatpush1.bf16.msra.mxu0 %v1346
        %1372 = vmatprep.subr.bf16.mxu0 0
        %1373 = vmatpush1.bf16.msra.mxu0 %v1345
        %1374 = vmatprep.subr.bf16.mxu0 0
        %1375 = vmatpush1.bf16.msra.mxu0 %v1344
        %1376 = vmatprep.subr.bf16.mxu0 0
        %1377 = vmatpush2.bf16.msra.mxu0 0
        %1378 = vmatprep.subr.bf16.mxu0 0
        %1379 = vmatpush2.bf16.msra.mxu0 0
        %1380 = vmatprep.subr.bf16.mxu0 0
        %1381 = vmatpush2.bf16.msra.mxu0 0
        %1382 = vmatprep.subr.bf16.mxu0 0
        %1383 = vmatpush2.bf16.msra.mxu0 0
        %1384 = vmatprep.subr.bf16.mxu0 0
        %1385 = vmatpush2.bf16.msra.mxu0 0
        %1386 = vmatprep.subr.bf16.mxu0 0
        %1387 = vmatpush2.bf16.msra.mxu0 0
        %1388 = vmatprep.subr.bf16.mxu0 0
        %1389 = vmatpush2.bf16.msra.mxu0 0
        %1390 = vmatprep.subr.bf16.mxu0 0
        %1391 = vmatpush2.bf16.msra.mxu0 0
        %1392 = vmatprep.mubr.bf16.mxu0 0
        %1393 = vmatmul.mubr.bf16.gmra.mxu0 %v1288
        %v1394 = vpop.f32.mrf.mxu0
        %v1395 = vadd.f32 %v1310, %v1394
        %v1396 = vpop.f32.mrf.mxu0
        %v1397 = vpop.f32.mrf.mxu0
        %v1398 = vpop.f32.mrf.mxu0
        %1399 = vdwg.mxu0
        %v1400 = vadd.f32 %v540, %v1395
        %v1401 = vld [vmem:[%s7] sm:$0x1]
        %v1402 = vld [vmem:[%s8] sm:$0x1]
        %1403 = vadd.xlane.f32.xlu0 %v1400
        %v1404 = vpop.xlane.xlu0 %1403
        %v1405 = vmul.f32 %v1404, %v545
        %v1406 = vsub.f32 %v1400, %v1405
        %v1407 = vmul.f32 %v1406, %v1406
        %1408 = vadd.xlane.f32.xlu0 %v1407
        %v1409 = vpop.xlane.xlu0 %1408
        %v1410 = vmul.f32 %v1409, %v545
        %v1411 = vadd.f32 %v1410, 1e-05
        %v1412 = vrsqrt.pop %v1411
        %v1413 = vmul.f32 %v1406, %v1412
        %v1415 = vlaneseq
        %v1416 = vshrl.u32 %v1415, 7
        %v1417 = vsub.s32 0, %v1416
        %v1418 = vrot.slane %v1401, %v1417
        %v1420 = vmul.f32 %v1413, %v1418
        %v1422 = vlaneseq
        %v1423 = vshrl.u32 %v1422, 7
        %v1424 = vsub.s32 0, %v1423
        %v1425 = vrot.slane %v1402, %v1424
        %v1427 = vadd.f32 %v1420, %v1425
        %v1428 = vpack.c.bf16 %v1427, %v1427
        %v1429 = vld [vmem:[#allocation11] sm:$0xff]
        %v1430 = vld [vmem:[#allocation11 + $0x8] sm:$0xff]
        %v1431 = vld [vmem:[#allocation11 + $0x10] sm:$0xff]
        %v1432 = vld [vmem:[#allocation11 + $0x18] sm:$0xff]
        %v1433 = vld [vmem:[#allocation11 + $0x20] sm:$0xff]
        %v1434 = vld [vmem:[#allocation11 + $0x28] sm:$0xff]
        %v1435 = vld [vmem:[#allocation11 + $0x30] sm:$0xff]
        %v1436 = vld [vmem:[#allocation11 + $0x38] sm:$0xff]
        %v1437 = vld [vmem:[#allocation11 + $0x40] sm:$0xff]
        %v1438 = vld [vmem:[#allocation11 + $0x48] sm:$0xff]
        %v1439 = vld [vmem:[#allocation11 + $0x50] sm:$0xff]
        %v1440 = vld [vmem:[#allocation11 + $0x58] sm:$0xff]
        %v1441 = vld [vmem:[#allocation11 + $0x60] sm:$0xff]
        %v1442 = vld [vmem:[#allocation11 + $0x68] sm:$0xff]
        %v1443 = vld [vmem:[#allocation11 + $0x70] sm:$0xff]
        %v1444 = vld [vmem:[#allocation11 + $0x78] sm:$0xff]
        %v1445 = vld [vmem:[#allocation11 + $0x80] sm:$0xff]
        %v1446 = vld [vmem:[#allocation11 + $0x88] sm:$0xff]
        %v1447 = vld [vmem:[#allocation11 + $0x90] sm:$0xff]
        %v1448 = vld [vmem:[#allocation11 + $0x98] sm:$0xff]
        %v1449 = vld [vmem:[#allocation11 + $0xa0] sm:$0xff]
        %v1450 = vld [vmem:[#allocation11 + $0xa8] sm:$0xff]
        %v1451 = vld [vmem:[#allocation11 + $0xb0] sm:$0xff]
        %v1452 = vld [vmem:[#allocation11 + $0xb8] sm:$0xff]
        %v1453 = vld [vmem:[#allocation11 + $0xc0] sm:$0xff]
        %v1454 = vld [vmem:[#allocation11 + $0xc8] sm:$0xff]
        %v1455 = vld [vmem:[#allocation11 + $0xd0] sm:$0xff]
        %v1456 = vld [vmem:[#allocation11 + $0xd8] sm:$0xff]
        %v1457 = vld [vmem:[#allocation11 + $0xe0] sm:$0xff]
        %v1458 = vld [vmem:[#allocation11 + $0xe8] sm:$0xff]
        %v1459 = vld [vmem:[#allocation11 + $0xf0] sm:$0xff]
        %v1460 = vld [vmem:[#allocation11 + $0xf8] sm:$0xff]
        %v1461 = vld [vmem:[%s10] sm:$0xf]
        %v1463 = vlaneseq
        %v1464 = vshrl.u32 %v1463, 7
        %v1465 = vsub.s32 0, %v1464
        %v1466 = vrot.slane %v1461, %v1465
        %v1467 = vlaneseq
        %v1468 = vshrl.u32 %v1467, 7
        %v1469 = vsub.s32 1, %v1468
        %v1470 = vrot.slane %v1461, %v1469
        %v1471 = vlaneseq
        %v1472 = vshrl.u32 %v1471, 7
        %v1473 = vsub.s32 2, %v1472
        %v1474 = vrot.slane %v1461, %v1473
        %v1475 = vlaneseq
        %v1476 = vshrl.u32 %v1475, 7
        %v1477 = vsub.s32 3, %v1476
        %v1478 = vrot.slane %v1461, %v1477
        %v1515 = vunpack.c.l.b16 %v1429
        %v1516 = vunpack.c.h.b16 %v1429
        %v1517 = vunpack.c.l.b16 %v1430
        %v1518 = vunpack.c.h.b16 %v1430
        %v1519 = vunpack.c.l.b16 %v1431
        %v1520 = vunpack.c.h.b16 %v1431
        %v1521 = vunpack.c.l.b16 %v1432
        %v1522 = vunpack.c.h.b16 %v1432
        %v1523 = vunpack.c.l.b16 %v1433
        %v1524 = vunpack.c.h.b16 %v1433
        %v1525 = vunpack.c.l.b16 %v1434
        %v1526 = vunpack.c.h.b16 %v1434
        %v1527 = vunpack.c.l.b16 %v1435
        %v1528 = vunpack.c.h.b16 %v1435
        %v1529 = vunpack.c.l.b16 %v1436
        %v1530 = vunpack.c.h.b16 %v1436
        %v1531 = vunpack.c.l.b16 %v1437
        %v1532 = vunpack.c.h.b16 %v1437
        %v1533 = vunpack.c.l.b16 %v1438
        %v1534 = vunpack.c.h.b16 %v1438
        %v1535 = vunpack.c.l.b16 %v1439
        %v1536 = vunpack.c.h.b16 %v1439
        %v1537 = vunpack.c.l.b16 %v1440
        %v1538 = vunpack.c.h.b16 %v1440
        %v1539 = vunpack.c.l.b16 %v1441
        %v1540 = vunpack.c.h.b16 %v1441
        %v1541 = vunpack.c.l.b16 %v1442
        %v1542 = vunpack.c.h.b16 %v1442
        %v1543 = vunpack.c.l.b16 %v1443
        %v1544 = vunpack.c.h.b16 %v1443
        %v1545 = vunpack.c.l.b16 %v1444
        %v1546 = vunpack.c.h.b16 %v1444
        %v1547 = vunpack.c.l.b16 %v1445
        %v1548 = vunpack.c.h.b16 %v1445
        %v1549 = vunpack.c.l.b16 %v1446
        %v1550 = vunpack.c.h.b16 %v1446
        %v1551 = vunpack.c.l.b16 %v1447
        %v1552 = vunpack.c.h.b16 %v1447
        %v1553 = vunpack.c.l.b16 %v1448
        %v1554 = vunpack.c.h.b16 %v1448
        %v1555 = vunpack.c.l.b16 %v1449
        %v1556 = vunpack.c.h.b16 %v1449
        %v1557 = vunpack.c.l.b16 %v1450
        %v1558 = vunpack.c.h.b16 %v1450
        %v1559 = vunpack.c.l.b16 %v1451
        %v1560 = vunpack.c.h.b16 %v1451
        %v1561 = vunpack.c.l.b16 %v1452
        %v1562 = vunpack.c.h.b16 %v1452
        %v1563 = vunpack.c.l.b16 %v1453
        %v1564 = vunpack.c.h.b16 %v1453
        %v1565 = vunpack.c.l.b16 %v1454
        %v1566 = vunpack.c.h.b16 %v1454
        %v1567 = vunpack.c.l.b16 %v1455
        %v1568 = vunpack.c.h.b16 %v1455
        %v1569 = vunpack.c.l.b16 %v1456
        %v1570 = vunpack.c.h.b16 %v1456
        %v1571 = vunpack.c.l.b16 %v1457
        %v1572 = vunpack.c.h.b16 %v1457
        %v1573 = vunpack.c.l.b16 %v1458
        %v1574 = vunpack.c.h.b16 %v1458
        %v1575 = vunpack.c.l.b16 %v1459
        %v1576 = vunpack.c.h.b16 %v1459
        %v1577 = vunpack.c.l.b16 %v1460
        %v1578 = vunpack.c.h.b16 %v1460
        %v1579 = vpack.c.b16 %v1519, %v1515
        %v1580 = vpack.c.b16 %v1520, %v1516
        %v1581 = vpack.c.b16 %v1521, %v1517
        %v1582 = vpack.c.b16 %v1522, %v1518
        %v1583 = vpack.c.b16 %v1527, %v1523
        %v1584 = vpack.c.b16 %v1528, %v1524
        %v1585 = vpack.c.b16 %v1529, %v1525
        %v1586 = vpack.c.b16 %v1530, %v1526
        %v1587 = vpack.c.b16 %v1535, %v1531
        %v1588 = vpack.c.b16 %v1536, %v1532
        %v1589 = vpack.c.b16 %v1537, %v1533
        %v1590 = vpack.c.b16 %v1538, %v1534
        %v1591 = vpack.c.b16 %v1543, %v1539
        %v1592 = vpack.c.b16 %v1544, %v1540
        %v1593 = vpack.c.b16 %v1545, %v1541
        %v1594 = vpack.c.b16 %v1546, %v1542
        %v1595 = vpack.c.b16 %v1551, %v1547
        %v1596 = vpack.c.b16 %v1552, %v1548
        %v1597 = vpack.c.b16 %v1553, %v1549
        %v1598 = vpack.c.b16 %v1554, %v1550
        %v1599 = vpack.c.b16 %v1559, %v1555
        %v1600 = vpack.c.b16 %v1560, %v1556
        %v1601 = vpack.c.b16 %v1561, %v1557
        %v1602 = vpack.c.b16 %v1562, %v1558
        %v1603 = vpack.c.b16 %v1567, %v1563
        %v1604 = vpack.c.b16 %v1568, %v1564
        %v1605 = vpack.c.b16 %v1569, %v1565
        %v1606 = vpack.c.b16 %v1570, %v1566
        %v1607 = vpack.c.b16 %v1575, %v1571
        %v1608 = vpack.c.b16 %v1576, %v1572
        %v1609 = vpack.c.b16 %v1577, %v1573
        %v1610 = vpack.c.b16 %v1578, %v1574
        %1643 = vmatprep.subr.bf16.mxu0 %v1608
        %1644 = vmatpush1.bf16.msra.mxu0 %v1607
        %1645 = vmatprep.subr.bf16.mxu0 %v1604
        %1646 = vmatpush1.bf16.msra.mxu0 %v1603
        %1647 = vmatprep.subr.bf16.mxu0 %v1600
        %1648 = vmatpush1.bf16.msra.mxu0 %v1599
        %1649 = vmatprep.subr.bf16.mxu0 %v1596
        %1650 = vmatpush1.bf16.msra.mxu0 %v1595
        %1651 = vmatprep.subr.bf16.mxu0 %v1592
        %1652 = vmatpush1.bf16.msra.mxu0 %v1591
        %1653 = vmatprep.subr.bf16.mxu0 %v1588
        %1654 = vmatpush1.bf16.msra.mxu0 %v1587
        %1655 = vmatprep.subr.bf16.mxu0 %v1584
        %1656 = vmatpush1.bf16.msra.mxu0 %v1583
        %1657 = vmatprep.subr.bf16.mxu0 %v1580
        %1658 = vmatpush1.bf16.msra.mxu0 %v1579
        %1659 = vmatprep.subr.bf16.mxu0 0
        %1660 = vmatpush2.bf16.msra.mxu0 0
        %1661 = vmatprep.subr.bf16.mxu0 0
        %1662 = vmatpush2.bf16.msra.mxu0 0
        %1663 = vmatprep.subr.bf16.mxu0 0
        %1664 = vmatpush2.bf16.msra.mxu0 0
        %1665 = vmatprep.subr.bf16.mxu0 0
        %1666 = vmatpush2.bf16.msra.mxu0 0
        %1667 = vmatprep.subr.bf16.mxu0 0
        %1668 = vmatpush2.bf16.msra.mxu0 0
        %1669 = vmatprep.subr.bf16.mxu0 0
        %1670 = vmatpush2.bf16.msra.mxu0 0
        %1671 = vmatprep.subr.bf16.mxu0 0
        %1672 = vmatpush2.bf16.msra.mxu0 0
        %1673 = vmatprep.subr.bf16.mxu0 0
        %1674 = vmatpush2.bf16.msra.mxu0 0
        %1675 = vmatprep.mubr.bf16.mxu0 0
        %1676 = vmatmul.mubr.bf16.gmra.mxu0 %v1428
        %v1677 = vpop.f32.mrf.mxu0
        %v1678 = vadd.f32 %v1466, %v1677
        %v1679 = vpop.f32.mrf.mxu0
        %v1680 = vadd.f32 %v1470, %v1679
        %v1681 = vpop.f32.mrf.mxu0
        %v1682 = vpop.f32.mrf.mxu0
        %1683 = vdwg.mxu0
        %1684 = vmatprep.subr.bf16.mxu0 %v1610
        %1685 = vmatpush1.bf16.msra.mxu0 %v1609
        %1686 = vmatprep.subr.bf16.mxu0 %v1606
        %1687 = vmatpush1.bf16.msra.mxu0 %v1605
        %1688 = vmatprep.subr.bf16.mxu0 %v1602
        %1689 = vmatpush1.bf16.msra.mxu0 %v1601
        %1690 = vmatprep.subr.bf16.mxu0 %v1598
        %1691 = vmatpush1.bf16.msra.mxu0 %v1597
        %1692 = vmatprep.subr.bf16.mxu0 %v1594
        %1693 = vmatpush1.bf16.msra.mxu0 %v1593
        %1694 = vmatprep.subr.bf16.mxu0 %v1590
        %1695 = vmatpush1.bf16.msra.mxu0 %v1589
        %1696 = vmatprep.subr.bf16.mxu0 %v1586
        %1697 = vmatpush1.bf16.msra.mxu0 %v1585
        %1698 = vmatprep.subr.bf16.mxu0 %v1582
        %1699 = vmatpush1.bf16.msra.mxu0 %v1581
        %1700 = vmatprep.subr.bf16.mxu0 0
        %1701 = vmatpush2.bf16.msra.mxu0 0
        %1702 = vmatprep.subr.bf16.mxu0 0
        %1703 = vmatpush2.bf16.msra.mxu0 0
        %1704 = vmatprep.subr.bf16.mxu0 0
        %1705 = vmatpush2.bf16.msra.mxu0 0
        %1706 = vmatprep.subr.bf16.mxu0 0
        %1707 = vmatpush2.bf16.msra.mxu0 0
        %1708 = vmatprep.subr.bf16.mxu0 0
        %1709 = vmatpush2.bf16.msra.mxu0 0
        %1710 = vmatprep.subr.bf16.mxu0 0
        %1711 = vmatpush2.bf16.msra.mxu0 0
        %1712 = vmatprep.subr.bf16.mxu0 0
        %1713 = vmatpush2.bf16.msra.mxu0 0
        %1714 = vmatprep.subr.bf16.mxu0 0
        %1715 = vmatpush2.bf16.msra.mxu0 0
        %1716 = vmatprep.mubr.bf16.mxu0 0
        %1717 = vmatmul.mubr.bf16.gmra.mxu0 %v1428
        %v1718 = vpop.f32.mrf.mxu0
        %v1719 = vadd.f32 %v1474, %v1718
        %v1720 = vpop.f32.mrf.mxu0
        %v1721 = vadd.f32 %v1478, %v1720
        %v1722 = vpop.f32.mrf.mxu0
        %v1723 = vpop.f32.mrf.mxu0
        %1724 = vdwg.mxu0
        %v1725 = vmul.f32 %v1678, 0.5
        %v1726 = vmul.f32 %v1680, 0.5
        %v1727 = vmul.f32 %v1719, 0.5
        %v1728 = vmul.f32 %v1721, 0.5
        %v1729 = vmul.f32 %v1678, 0.70710677
        %v1730 = vmul.f32 %v1680, 0.70710677
        %v1731 = vmul.f32 %v1719, 0.70710677
        %v1732 = vmul.f32 %v1721, 0.70710677
        %vm1733 = vcmp.ge.f32.partialorder %v1729, 0.0
        %vm1734 = vcmp.ge.f32.partialorder %v1730, 0.0
        %vm1735 = vcmp.ge.f32.partialorder %v1731, 0.0
        %vm1736 = vcmp.ge.f32.partialorder %v1732, 0.0
        %v1737 = vsel %vm1733, 1.0, -1.0
        %v1738 = vsel %vm1734, 1.0, -1.0
        %v1739 = vsel %vm1735, 1.0, -1.0
        %v1740 = vsel %vm1736, 1.0, -1.0
        %v1741 = vand.u32 2147483647, %v1729
        %v1742 = vand.u32 2147483647, %v1730
        %v1743 = vand.u32 2147483647, %v1731
        %v1744 = vand.u32 2147483647, %v1732
        %v1745 = vmul.f32 %v1741, 0.3275911
        %v1746 = vmul.f32 %v1742, 0.3275911
        %v1747 = vmul.f32 %v1743, 0.3275911
        %v1748 = vmul.f32 %v1744, 0.3275911
        %v1749 = vadd.f32 %v1745, 1.0
        %v1750 = vadd.f32 %v1746, 1.0
        %v1751 = vadd.f32 %v1747, 1.0
        %v1752 = vadd.f32 %v1748, 1.0
        %v1753 = vrcp.pop %v1749
        %v1754 = vmul.f32 1.0, %v1753
        %v1755 = vrcp.pop %v1750
        %v1756 = vmul.f32 1.0, %v1755
        %v1757 = vrcp.pop %v1751
        %v1758 = vmul.f32 1.0, %v1757
        %v1759 = vrcp.pop %v1752
        %v1760 = vmul.f32 1.0, %v1759
        %v1761 = vmul.f32 %v1754, 1.0614054
        %v1762 = vmul.f32 %v1756, 1.0614054
        %v1763 = vmul.f32 %v1758, 1.0614054
        %v1764 = vmul.f32 %v1760, 1.0614054
        %v1765 = vadd.f32 %v1761, -1.4531521
        %v1766 = vadd.f32 %v1762, -1.4531521
        %v1767 = vadd.f32 %v1763, -1.4531521
        %v1768 = vadd.f32 %v1764, -1.4531521
        %v1769 = vmul.f32 %v1765, %v1754
        %v1770 = vmul.f32 %v1766, %v1756
        %v1771 = vmul.f32 %v1767, %v1758
        %v1772 = vmul.f32 %v1768, %v1760
        %v1773 = vadd.f32 %v1769, 1.4214138
        %v1774 = vadd.f32 %v1770, 1.4214138
        %v1775 = vadd.f32 %v1771, 1.4214138
        %v1776 = vadd.f32 %v1772, 1.4214138
        %v1777 = vmul.f32 %v1773, %v1754
        %v1778 = vmul.f32 %v1774, %v1756
        %v1779 = vmul.f32 %v1775, %v1758
        %v1780 = vmul.f32 %v1776, %v1760
        %v1781 = vadd.f32 %v1777, -0.28449672
        %v1782 = vadd.f32 %v1778, -0.28449672
        %v1783 = vadd.f32 %v1779, -0.28449672
        %v1784 = vadd.f32 %v1780, -0.28449672
        %v1785 = vmul.f32 %v1781, %v1754
        %v1786 = vmul.f32 %v1782, %v1756
        %v1787 = vmul.f32 %v1783, %v1758
        %v1788 = vmul.f32 %v1784, %v1760
        %v1789 = vadd.f32 %v1785, 0.2548296
        %v1790 = vadd.f32 %v1786, 0.2548296
        %v1791 = vadd.f32 %v1787, 0.2548296
        %v1792 = vadd.f32 %v1788, 0.2548296
        %v1793 = vmul.f32 %v1789, %v1754
        %v1794 = vmul.f32 %v1790, %v1756
        %v1795 = vmul.f32 %v1791, %v1758
        %v1796 = vmul.f32 %v1792, %v1760
        %v1797 = vsub.f32 0.0, %v1741
        %v1798 = vsub.f32 0.0, %v1742
        %v1799 = vsub.f32 0.0, %v1743
        %v1800 = vsub.f32 0.0, %v1744
        %v1801 = vmul.f32 %v1797, %v1741
        %v1802 = vmul.f32 %v1798, %v1742
        %v1803 = vmul.f32 %v1799, %v1743
        %v1804 = vmul.f32 %v1800, %v1744
        %v1805 = vmul.f32 %v1801, 1.442695
        %v1806 = vpow.pop %v1805
        %v1807 = vmul.f32 %v1802, 1.442695
        %v1808 = vpow.pop %v1807
        %v1809 = vmul.f32 %v1803, 1.442695
        %v1810 = vpow.pop %v1809
        %v1811 = vmul.f32 %v1804, 1.442695
        %v1812 = vpow.pop %v1811
        %v1813 = vmul.f32 %v1793, %v1806
        %v1814 = vmul.f32 %v1794, %v1808
        %v1815 = vmul.f32 %v1795, %v1810
        %v1816 = vmul.f32 %v1796, %v1812
        %v1817 = vsub.f32 1.0, %v1813
        %v1818 = vsub.f32 1.0, %v1814
        %v1819 = vsub.f32 1.0, %v1815
        %v1820 = vsub.f32 1.0, %v1816
        %v1821 = vmul.f32 %v1737, %v1817
        %v1822 = vmul.f32 %v1738, %v1818
        %v1823 = vmul.f32 %v1739, %v1819
        %v1824 = vmul.f32 %v1740, %v1820
        %v1825 = vadd.f32 %v1821, 1.0
        %v1826 = vadd.f32 %v1822, 1.0
        %v1827 = vadd.f32 %v1823, 1.0
        %v1828 = vadd.f32 %v1824, 1.0
        %v1829 = vmul.f32 %v1725, %v1825
        %v1830 = vmul.f32 %v1726, %v1826
        %v1831 = vmul.f32 %v1727, %v1827
        %v1832 = vmul.f32 %v1728, %v1828
        %v1833 = vpack.c.bf16 %v1829, %v1829
        %v1834 = vpack.c.bf16 %v1830, %v1830
        %v1835 = vpack.c.bf16 %v1831, %v1831
        %v1836 = vpack.c.bf16 %v1832, %v1832
        %v1837 = vld [vmem:[#allocation13] sm:$0xf]
        %v1838 = vld [vmem:[#allocation13 + $0x4] sm:$0xf]
        %v1839 = vld [vmem:[#allocation13 + $0x8] sm:$0xf]
        %v1840 = vld [vmem:[#allocation13 + $0xc] sm:$0xf]
        %v1841 = vld [vmem:[#allocation13 + $0x10] sm:$0xf]
        %v1842 = vld [vmem:[#allocation13 + $0x14] sm:$0xf]
        %v1843 = vld [vmem:[#allocation13 + $0x18] sm:$0xf]
        %v1844 = vld [vmem:[#allocation13 + $0x1c] sm:$0xf]
        %v1845 = vld [vmem:[#allocation13 + $0x20] sm:$0xf]
        %v1846 = vld [vmem:[#allocation13 + $0x24] sm:$0xf]
        %v1847 = vld [vmem:[#allocation13 + $0x28] sm:$0xf]
        %v1848 = vld [vmem:[#allocation13 + $0x2c] sm:$0xf]
        %v1849 = vld [vmem:[#allocation13 + $0x30] sm:$0xf]
        %v1850 = vld [vmem:[#allocation13 + $0x34] sm:$0xf]
        %v1851 = vld [vmem:[#allocation13 + $0x38] sm:$0xf]
        %v1852 = vld [vmem:[#allocation13 + $0x3c] sm:$0xf]
        %v1853 = vld [vmem:[#allocation13 + $0x40] sm:$0xf]
        %v1854 = vld [vmem:[#allocation13 + $0x44] sm:$0xf]
        %v1855 = vld [vmem:[#allocation13 + $0x48] sm:$0xf]
        %v1856 = vld [vmem:[#allocation13 + $0x4c] sm:$0xf]
        %v1857 = vld [vmem:[#allocation13 + $0x50] sm:$0xf]
        %v1858 = vld [vmem:[#allocation13 + $0x54] sm:$0xf]
        %v1859 = vld [vmem:[#allocation13 + $0x58] sm:$0xf]
        %v1860 = vld [vmem:[#allocation13 + $0x5c] sm:$0xf]
        %v1861 = vld [vmem:[#allocation13 + $0x60] sm:$0xf]
        %v1862 = vld [vmem:[#allocation13 + $0x64] sm:$0xf]
        %v1863 = vld [vmem:[#allocation13 + $0x68] sm:$0xf]
        %v1864 = vld [vmem:[#allocation13 + $0x6c] sm:$0xf]
        %v1865 = vld [vmem:[#allocation13 + $0x70] sm:$0xf]
        %v1866 = vld [vmem:[#allocation13 + $0x74] sm:$0xf]
        %v1867 = vld [vmem:[#allocation13 + $0x78] sm:$0xf]
        %v1868 = vld [vmem:[#allocation13 + $0x7c] sm:$0xf]
        %v1869 = vld [vmem:[#allocation13 + $0x80] sm:$0xf]
        %v1870 = vld [vmem:[#allocation13 + $0x84] sm:$0xf]
        %v1871 = vld [vmem:[#allocation13 + $0x88] sm:$0xf]
        %v1872 = vld [vmem:[#allocation13 + $0x8c] sm:$0xf]
        %v1873 = vld [vmem:[#allocation13 + $0x90] sm:$0xf]
        %v1874 = vld [vmem:[#allocation13 + $0x94] sm:$0xf]
        %v1875 = vld [vmem:[#allocation13 + $0x98] sm:$0xf]
        %v1876 = vld [vmem:[#allocation13 + $0x9c] sm:$0xf]
        %v1877 = vld [vmem:[#allocation13 + $0xa0] sm:$0xf]
        %v1878 = vld [vmem:[#allocation13 + $0xa4] sm:$0xf]
        %v1879 = vld [vmem:[#allocation13 + $0xa8] sm:$0xf]
        %v1880 = vld [vmem:[#allocation13 + $0xac] sm:$0xf]
        %v1881 = vld [vmem:[#allocation13 + $0xb0] sm:$0xf]
        %v1882 = vld [vmem:[#allocation13 + $0xb4] sm:$0xf]
        %v1883 = vld [vmem:[#allocation13 + $0xb8] sm:$0xf]
        %v1884 = vld [vmem:[#allocation13 + $0xbc] sm:$0xf]
        %v1885 = vld [vmem:[#allocation13 + $0xc0] sm:$0xf]
        %v1886 = vld [vmem:[#allocation13 + $0xc4] sm:$0xf]
        %v1887 = vld [vmem:[#allocation13 + $0xc8] sm:$0xf]
        %v1888 = vld [vmem:[#allocation13 + $0xcc] sm:$0xf]
        %v1889 = vld [vmem:[#allocation13 + $0xd0] sm:$0xf]
        %v1890 = vld [vmem:[#allocation13 + $0xd4] sm:$0xf]
        %v1891 = vld [vmem:[#allocation13 + $0xd8] sm:$0xf]
        %v1892 = vld [vmem:[#allocation13 + $0xdc] sm:$0xf]
        %v1893 = vld [vmem:[#allocation13 + $0xe0] sm:$0xf]
        %v1894 = vld [vmem:[#allocation13 + $0xe4] sm:$0xf]
        %v1895 = vld [vmem:[#allocation13 + $0xe8] sm:$0xf]
        %v1896 = vld [vmem:[#allocation13 + $0xec] sm:$0xf]
        %v1897 = vld [vmem:[#allocation13 + $0xf0] sm:$0xf]
        %v1898 = vld [vmem:[#allocation13 + $0xf4] sm:$0xf]
        %v1899 = vld [vmem:[#allocation13 + $0xf8] sm:$0xf]
        %v1900 = vld [vmem:[#allocation13 + $0xfc] sm:$0xf]
        %v1901 = vld [vmem:[%s12] sm:$0x1]
        %v1903 = vlaneseq
        %v1904 = vshrl.u32 %v1903, 7
        %v1905 = vsub.s32 0, %v1904
        %v1906 = vrot.slane %v1901, %v1905
        %v1972 = vunpack.c.l.b16 %v1837
        %v1973 = vunpack.c.l.b16 %v1838
        %v1974 = vunpack.c.l.b16 %v1839
        %v1975 = vunpack.c.l.b16 %v1840
        %v1976 = vunpack.c.l.b16 %v1841
        %v1977 = vunpack.c.l.b16 %v1842
        %v1978 = vunpack.c.l.b16 %v1843
        %v1979 = vunpack.c.l.b16 %v1844
        %v1980 = vunpack.c.l.b16 %v1845
        %v1981 = vunpack.c.l.b16 %v1846
        %v1982 = vunpack.c.l.b16 %v1847
        %v1983 = vunpack.c.l.b16 %v1848
        %v1984 = vunpack.c.l.b16 %v1849
        %v1985 = vunpack.c.l.b16 %v1850
        %v1986 = vunpack.c.l.b16 %v1851
        %v1987 = vunpack.c.l.b16 %v1852
        %v1988 = vunpack.c.l.b16 %v1853
        %v1989 = vunpack.c.l.b16 %v1854
        %v1990 = vunpack.c.l.b16 %v1855
        %v1991 = vunpack.c.l.b16 %v1856
        %v1992 = vunpack.c.l.b16 %v1857
        %v1993 = vunpack.c.l.b16 %v1858
        %v1994 = vunpack.c.l.b16 %v1859
        %v1995 = vunpack.c.l.b16 %v1860
        %v1996 = vunpack.c.l.b16 %v1861
        %v1997 = vunpack.c.l.b16 %v1862
        %v1998 = vunpack.c.l.b16 %v1863
        %v1999 = vunpack.c.l.b16 %v1864
        %v2000 = vunpack.c.l.b16 %v1865
        %v2001 = vunpack.c.l.b16 %v1866
        %v2002 = vunpack.c.l.b16 %v1867
        %v2003 = vunpack.c.l.b16 %v1868
        %v2004 = vunpack.c.l.b16 %v1869
        %v2005 = vunpack.c.l.b16 %v1870
        %v2006 = vunpack.c.l.b16 %v1871
        %v2007 = vunpack.c.l.b16 %v1872
        %v2008 = vunpack.c.l.b16 %v1873
        %v2009 = vunpack.c.l.b16 %v1874
        %v2010 = vunpack.c.l.b16 %v1875
        %v2011 = vunpack.c.l.b16 %v1876
        %v2012 = vunpack.c.l.b16 %v1877
        %v2013 = vunpack.c.l.b16 %v1878
        %v2014 = vunpack.c.l.b16 %v1879
        %v2015 = vunpack.c.l.b16 %v1880
        %v2016 = vunpack.c.l.b16 %v1881
        %v2017 = vunpack.c.l.b16 %v1882
        %v2018 = vunpack.c.l.b16 %v1883
        %v2019 = vunpack.c.l.b16 %v1884
        %v2020 = vunpack.c.l.b16 %v1885
        %v2021 = vunpack.c.l.b16 %v1886
        %v2022 = vunpack.c.l.b16 %v1887
        %v2023 = vunpack.c.l.b16 %v1888
        %v2024 = vunpack.c.l.b16 %v1889
        %v2025 = vunpack.c.l.b16 %v1890
        %v2026 = vunpack.c.l.b16 %v1891
        %v2027 = vunpack.c.l.b16 %v1892
        %v2028 = vunpack.c.l.b16 %v1893
        %v2029 = vunpack.c.l.b16 %v1894
        %v2030 = vunpack.c.l.b16 %v1895
        %v2031 = vunpack.c.l.b16 %v1896
        %v2032 = vunpack.c.l.b16 %v1897
        %v2033 = vunpack.c.l.b16 %v1898
        %v2034 = vunpack.c.l.b16 %v1899
        %v2035 = vunpack.c.l.b16 %v1900
        %v2036 = vpack.c.b16 %v1973, %v1972
        %v2037 = vpack.c.b16 %v1975, %v1974
        %v2038 = vpack.c.b16 %v1977, %v1976
        %v2039 = vpack.c.b16 %v1979, %v1978
        %v2040 = vpack.c.b16 %v1981, %v1980
        %v2041 = vpack.c.b16 %v1983, %v1982
        %v2042 = vpack.c.b16 %v1985, %v1984
        %v2043 = vpack.c.b16 %v1987, %v1986
        %v2044 = vpack.c.b16 %v1989, %v1988
        %v2045 = vpack.c.b16 %v1991, %v1990
        %v2046 = vpack.c.b16 %v1993, %v1992
        %v2047 = vpack.c.b16 %v1995, %v1994
        %v2048 = vpack.c.b16 %v1997, %v1996
        %v2049 = vpack.c.b16 %v1999, %v1998
        %v2050 = vpack.c.b16 %v2001, %v2000
        %v2051 = vpack.c.b16 %v2003, %v2002
        %v2052 = vpack.c.b16 %v2005, %v2004
        %v2053 = vpack.c.b16 %v2007, %v2006
        %v2054 = vpack.c.b16 %v2009, %v2008
        %v2055 = vpack.c.b16 %v2011, %v2010
        %v2056 = vpack.c.b16 %v2013, %v2012
        %v2057 = vpack.c.b16 %v2015, %v2014
        %v2058 = vpack.c.b16 %v2017, %v2016
        %v2059 = vpack.c.b16 %v2019, %v2018
        %v2060 = vpack.c.b16 %v2021, %v2020
        %v2061 = vpack.c.b16 %v2023, %v2022
        %v2062 = vpack.c.b16 %v2025, %v2024
        %v2063 = vpack.c.b16 %v2027, %v2026
        %v2064 = vpack.c.b16 %v2029, %v2028
        %v2065 = vpack.c.b16 %v2031, %v2030
        %v2066 = vpack.c.b16 %v2033, %v2032
        %v2067 = vpack.c.b16 %v2035, %v2034
        %2100 = vmatprep.subr.bf16.mxu0 0
        %2101 = vmatpush1.bf16.msra.mxu0 %v2043
        %2102 = vmatprep.subr.bf16.mxu0 0
        %2103 = vmatpush1.bf16.msra.mxu0 %v2042
        %2104 = vmatprep.subr.bf16.mxu0 0
        %2105 = vmatpush1.bf16.msra.mxu0 %v2041
        %2106 = vmatprep.subr.bf16.mxu0 0
        %2107 = vmatpush1.bf16.msra.mxu0 %v2040
        %2108 = vmatprep.subr.bf16.mxu0 0
        %2109 = vmatpush1.bf16.msra.mxu0 %v2039
        %2110 = vmatprep.subr.bf16.mxu0 0
        %2111 = vmatpush1.bf16.msra.mxu0 %v2038
        %2112 = vmatprep.subr.bf16.mxu0 0
        %2113 = vmatpush1.bf16.msra.mxu0 %v2037
        %2114 = vmatprep.subr.bf16.mxu0 0
        %2115 = vmatpush1.bf16.msra.mxu0 %v2036
        %2116 = vmatprep.subr.bf16.mxu0 0
        %2117 = vmatpush2.bf16.msra.mxu0 %v2051
        %2118 = vmatprep.subr.bf16.mxu0 0
        %2119 = vmatpush2.bf16.msra.mxu0 %v2050
        %2120 = vmatprep.subr.bf16.mxu0 0
        %2121 = vmatpush2.bf16.msra.mxu0 %v2049
        %2122 = vmatprep.subr.bf16.mxu0 0
        %2123 = vmatpush2.bf16.msra.mxu0 %v2048
        %2124 = vmatprep.subr.bf16.mxu0 0
        %2125 = vmatpush2.bf16.msra.mxu0 %v2047
        %2126 = vmatprep.subr.bf16.mxu0 0
        %2127 = vmatpush2.bf16.msra.mxu0 %v2046
        %2128 = vmatprep.subr.bf16.mxu0 0
        %2129 = vmatpush2.bf16.msra.mxu0 %v2045
        %2130 = vmatprep.subr.bf16.mxu0 0
        %2131 = vmatpush2.bf16.msra.mxu0 %v2044
        %2132 = vmatprep.mubr.bf16.mxu0 %v1834
        %2133 = vmatmul.mubr.bf16.gmra.mxu0 %v1833
        %v2134 = vpop.f32.mrf.mxu0
        %v2135 = vadd.f32 %v1906, %v2134
        %v2136 = vpop.f32.mrf.mxu0
        %v2137 = vpop.f32.mrf.mxu0
        %v2138 = vpop.f32.mrf.mxu0
        %2139 = vdwg.mxu0
        %2140 = vmatprep.subr.bf16.mxu0 0
        %2141 = vmatpush1.bf16.msra.mxu0 %v2059
        %2142 = vmatprep.subr.bf16.mxu0 0
        %2143 = vmatpush1.bf16.msra.mxu0 %v2058
        %2144 = vmatprep.subr.bf16.mxu0 0
        %2145 = vmatpush1.bf16.msra.mxu0 %v2057
        %2146 = vmatprep.subr.bf16.mxu0 0
        %2147 = vmatpush1.bf16.msra.mxu0 %v2056
        %2148 = vmatprep.subr.bf16.mxu0 0
        %2149 = vmatpush1.bf16.msra.mxu0 %v2055
        %2150 = vmatprep.subr.bf16.mxu0 0
        %2151 = vmatpush1.bf16.msra.mxu0 %v2054
        %2152 = vmatprep.subr.bf16.mxu0 0
        %2153 = vmatpush1.bf16.msra.mxu0 %v2053
        %2154 = vmatprep.subr.bf16.mxu0 0
        %2155 = vmatpush1.bf16.msra.mxu0 %v2052
        %2156 = vmatprep.subr.bf16.mxu0 0
        %2157 = vmatpush2.bf16.msra.mxu0 %v2067
        %2158 = vmatprep.subr.bf16.mxu0 0
        %2159 = vmatpush2.bf16.msra.mxu0 %v2066
        %2160 = vmatprep.subr.bf16.mxu0 0
        %2161 = vmatpush2.bf16.msra.mxu0 %v2065
        %2162 = vmatprep.subr.bf16.mxu0 0
        %2163 = vmatpush2.bf16.msra.mxu0 %v2064
        %2164 = vmatprep.subr.bf16.mxu0 0
        %2165 = vmatpush2.bf16.msra.mxu0 %v2063
        %2166 = vmatprep.subr.bf16.mxu0 0
        %2167 = vmatpush2.bf16.msra.mxu0 %v2062
        %2168 = vmatprep.subr.bf16.mxu0 0
        %2169 = vmatpush2.bf16.msra.mxu0 %v2061
        %2170 = vmatprep.subr.bf16.mxu0 0
        %2171 = vmatpush2.bf16.msra.mxu0 %v2060
        %2172 = vmatprep.mubr.bf16.mxu0 %v1836
        %2173 = vmatmul.mubr.bf16.gmra.mxu0 %v1835
        %v2174 = vpop.f32.mrf.mxu0
        %v2175 = vadd.f32 %v2135, %v2174
        %v2176 = vpop.f32.mrf.mxu0
        %v2177 = vpop.f32.mrf.mxu0
        %v2178 = vpop.f32.mrf.mxu0
        %2179 = vdwg.mxu0
        %v2180 = vadd.f32 %v1400, %v2175
        %2181 = vst [vmem:[%s538] sm:$0xff] %v2180
        %s2182 = sand.u32 %s319, 1
        %s2183 = scalar_lea.sflag [#allocation4], %s2182
        %s2184 = sand.u32 %s319, 1
        %s2185 = smul.addr %s2184, 8
        %s2186 = scalar_lea.vmem [#allocation14], %s2185
        // Predicated region
        $region101: #{tpu_custom_call.1} parent=71 // pred_check
          %p2187 = pneg %p329
        $region102: #{tpu_custom_call.1} parent=71 // pred_check_branch
          %2189 = sbr.rel (%p2187) target = $region104
        $region103: #{tpu_custom_call.1} parent=71 // pred_region
          %s2191 = ssub.s32 128, 128
          %2192 = vsyncadd %s2183, %s2191
          %s2193 = smul.addr %s33, 128
          %s2194 = scalar_lea.hbm %s13, %s2193
          %s2196 = sshll.u32 %s2186, 4
          %s2197 = int_to_ptr.vmem [resolvable:$true] %s2196
          %2199 = dma.vmem_to_hbm [thread:$0]  %s2197, 128, %s2194, %s2183
        $region104: #{tpu_custom_call.1} parent=71 // pred_fallthru
          _
      $region72: #{tpu_custom_call.1} parent=5 // pred_fallthru
        _
      %p2200 = scmp.le.s32.totalorder 2, %s28
      // Predicated region
      $region105: #{tpu_custom_call.1} parent=5 // pred_check
        %p2201 = pneg %p2200
      $region106: #{tpu_custom_call.1} parent=5 // pred_check_branch
        %2203 = sbr.rel (%p2201) target = $region108
      $region107: #{tpu_custom_call.1} parent=5 // pred_region
        %s2204 = ssub.s32 %s28, 2
        // Predicated region
        $region109: #{tpu_custom_call.1} parent=107 // pred_check
          %p2205 = pneg %p335
        $region110: #{tpu_custom_call.1} parent=107 // pred_check_branch
          %2207 = sbr.rel (%p2205) target = $region112
        $region111: #{tpu_custom_call.1} parent=107 // pred_region
          %s2208 = sand.u32 %s320, 1
          %s2209 = scalar_lea.sflag [#allocation4], %s2208
          %s2210 = sand.u32 %s320, 1
          %s2211 = smul.addr %s2210, 8
          %s2212 = scalar_lea.vmem [#allocation14], %s2211
          %2213 = dma.done %s2209, 128
        $region112: #{tpu_custom_call.1} parent=107 // pred_fallthru
          _
      $region108: #{tpu_custom_call.1} parent=5 // pred_fallthru
        _
    $region6: #{tpu_custom_call.1} parent=1 // loop_footer
      %s32 = sadd.s32 1, %s28
    $region7: #{tpu_custom_call.1} parent=1 // loop_footer_branch
      %27 = sbr.rel target = $region3
    $region8: #{tpu_custom_call.1} parent=1 // loop_exit
      _
    %2214 = vsyncpa [#allocation3], 1
    %s2215 = scalar_lea.sflag [#allocation3], 1
    %2216 = vsyncpa %s2215, 1
    %2217 = vsyncpa [#allocation6], 1
    %2218 = vsyncpa [#allocation9], 1
    %2219 = vsyncpa [#allocation12], 1
    %2220 = vsyncpa [#allocation4], 1
    %s2221 = scalar_lea.sflag [#allocation4], 1
    %2222 = vsyncpa %s2221, 1

</llo_original>
